<compile_context>
chip_gen: v6e
topology: v6e:2x2x1
jax: 0.10.0
libtpu: 0.0.40
codegen_flags: <defaults>
</compile_context>

<pallas_src>
import jax
import jax.numpy as jnp
import numpy as np
from jax.experimental import pallas as pl
from jax.experimental.pallas import tpu as pltpu

# ---------------- KANLinear hyper-parameters (efficient-kan defaults) -------------------
GRID_SIZE = 5
SPLINE_ORDER = 3
GRID_RANGE = (-1.0, 1.0)
N_COEFFS = GRID_SIZE + SPLINE_ORDER                      # 8 basis functions / input feature
_H = (GRID_RANGE[1] - GRID_RANGE[0]) / GRID_SIZE
# Knot vector (identical for every input feature), length grid_size + 2*spline_order + 1.
GRID_PTS = tuple(GRID_RANGE[0] + (j - SPLINE_ORDER) * _H
                 for j in range(GRID_SIZE + 2 * SPLINE_ORDER + 1))


# ---------------- shared math (used inside the kernel and by the JAX reference) ----------
def _silu(x):
    return x * jax.nn.sigmoid(x)


def _bspline_bases(x):
    """Cox–de Boor recursion with compile-time knots.

    x: (m, din) float32.  Returns a list of N_COEFFS arrays, each (m, din).
    Knot-difference reciprocals are Python constants (multiplies, no divides);
    the (x - knot) terms are hoisted; each (x >= knot) compare happens once and
    degree-0 bases are formed as ge[c] & ~ge[c+1].
    """
    g = GRID_PTS
    n = len(g) - 1
    ge = [x >= g[c] for c in range(len(g))]                               # one compare / knot
    d = [x - g[c] for c in range(len(g))]                                 # hoisted once
    bases = [(ge[c] & ~ge[c + 1]).astype(jnp.float32) for c in range(n)]
    for k in range(1, SPLINE_ORDER + 1):
        bases = [
            (d[c] * (1.0 / (g[c + k] - g[c]))) * bases[c]
            + (d[c + k + 1] * (-1.0 / (g[c + k + 1] - g[c + 1]))) * bases[c + 1]
            for c in range(n - k)
        ]
    return bases  # length N_COEFFS


def _fused_activation_bf16(x):
    """[silu(x) | B_0(x) | ... | B_{C-1}(x)] -> (m, 9*din) bf16 (parts cast before concat)."""
    parts = [_silu(x).astype(jnp.bfloat16)] + [b.astype(jnp.bfloat16)
                                               for b in _bspline_bases(x)]
    return jnp.concatenate(parts, axis=-1)


def _kan_apply(x, bw, sw):
    """Reference KANLinear (un-fused). x: (m,din); bw: (din,dout); sw: (C,din,dout)."""
    out = jnp.dot(_silu(x), bw.astype(jnp.float32), preferred_element_type=jnp.float32)
    for c, b in enumerate(_bspline_bases(x)):
        out = out + jnp.dot(b, sw[c].astype(jnp.float32),
                            preferred_element_type=jnp.float32)
    return out


def _route(x, gate_w, k):
    """Gate -> top-k -> softmax -> dense (token, expert) weights.  Tiny glue, plain JAX."""
    E = gate_w.shape[0]
    gate_logits = jnp.einsum("bth,eh->bte", x, gate_w)
    topw, topi = jax.lax.top_k(gate_logits, k)                    # (B, T, K)
    topw = jax.nn.softmax(topw.astype(jnp.float32), axis=-1).astype(x.dtype)
    onehot = topi[..., None] == jnp.arange(E, dtype=topi.dtype)   # (B, T, K, E)
    return jnp.sum(jnp.where(onehot, topw[..., None], 0.0), axis=-2)  # (B, T, E)


# ---------------- Pallas kernel ----------------------------------------------------------
def _moe_kan_kernel(order_ref, nact_ref, w_ref, x_ref, w12_ref, w3_ref,
                    out_ref, a1_ref, acc_ref):
    i = pl.program_id(0)          # token tile
    e = pl.program_id(1)          # compacted expert slot (reduction axis)

    @pl.when(e == 0)
    def _():
        acc_ref[...] = jnp.zeros_like(acc_ref)
        # Expert-invariant fused activation of x: computed once per token tile,
        # reused by every expert (bf16 scratch, ready for the MXU).
        a1_ref[...] = _fused_activation_bf16(x_ref[...].astype(jnp.float32))

    # Only the first n_active[i] slots carry real experts; the rest repeat the
    # last active expert id (so their weight DMA is elided) and are skipped here.
    @pl.when(e < nact_ref[i])
    def _():
        a1 = a1_ref[...]                                           # (tm, 9H) bf16

        # linear1 & linear2 share the basis of x: one (tm, 9H) x (9H, 2F) matmul.
        h12 = jnp.dot(a1, w12_ref[0], preferred_element_type=jnp.float32)  # (tm, 2F)
        f = h12.shape[-1] // 2
        z = h12[:, :f] * h12[:, f:]                                # (tm, F)

        # linear3: one (tm, 9F) x (9F, H) matmul.
        a3 = _fused_activation_bf16(z)                             # (tm, 9F) bf16
        y = jnp.dot(a3, w3_ref[0], preferred_element_type=jnp.float32)     # (tm, H)

        # Routing-weighted accumulation; w_ref[0] is (tm, 1), broadcast on the VPU.
        acc_ref[...] += w_ref[0] * y

    @pl.when(e == pl.num_programs(1) - 1)
    def _():
        out_ref[...] = acc_ref[...].astype(out_ref.dtype)


def moe_kan_forward(x, params, n_experts_per_token):
    B, T, H = x.shape
    gate_w = params["gate_w"]
    E = gate_w.shape[0]

    # ---- routing glue (tiny) ----
    w_dense = _route(x, gate_w, n_experts_per_token)               # (B, T, E)

    N = B * T
    x2 = x.reshape(N, H)
    w2 = w_dense.reshape(N, E).astype(jnp.float32)

    # Token tile: multiple of 8, never artificially shrunk below N just to make
    # more tiles; capped at 512 so VMEM stays comfortable at large N.
    tm = min(512, ((N + 7) // 8) * 8)
    n_tiles = (N + tm - 1) // tm
    Np = n_tiles * tm
    if Np != N:
        x2 = jnp.pad(x2, ((0, Np - N), (0, 0)))
        w2 = jnp.pad(w2, ((0, Np - N), (0, 0)))

    # ---- per-tile active-expert compaction (scalar prefetch, 1D int32 tables) ----
    counts = jnp.sum((w2 > 0).reshape(n_tiles, tm, E), axis=1)     # (n_tiles, E)
    active = counts > 0
    n_active = active.sum(axis=1).astype(jnp.int32)                # (n_tiles,)
    ar = jnp.arange(E, dtype=jnp.int32)
    sort_key = jnp.where(active, ar[None, :], ar[None, :] + E)
    order = jnp.argsort(sort_key, axis=1).astype(jnp.int32)        # active ids first
    last_active = jnp.take_along_axis(order, jnp.maximum(n_active - 1, 0)[:, None], axis=1)
    pos = jnp.arange(E, dtype=jnp.int32)[None, :]
    order = jnp.where(pos < n_active[:, None], order, last_active)  # repeat last -> DMA elided
    order_flat = order.reshape(-1)                                  # (n_tiles * E,)

    # Routing weights as a tiny (E, Np, 1) array; broadcast over H happens in-kernel.
    w_e = jnp.transpose(w2)[:, :, None]

    w12 = params["w12"]                                            # (E, 9H, 2F) bf16
    w3 = params["w3"]                                              # (E, 9F, H)  bf16
    F_ = w12.shape[-1] // 2

    out = pl.pallas_call(
        _moe_kan_kernel,
        out_shape=jax.ShapeDtypeStruct((Np, H), x.dtype),
        grid_spec=pltpu.PrefetchScalarGridSpec(
            num_scalar_prefetch=2,
            grid=(n_tiles, E),
            in_specs=[
                pl.BlockSpec((1, tm, 1),
                             lambda i, e, od, na: (od[i * E + e], i, 0)),     # routing w
                pl.BlockSpec((tm, H), lambda i, e, od, na: (i, 0)),           # x tokens
                pl.BlockSpec((1, 9 * H, 2 * F_),
                             lambda i, e, od, na: (od[i * E + e], 0, 0)),     # fused W1|W2
                pl.BlockSpec((1, 9 * F_, H),
                             lambda i, e, od, na: (od[i * E + e], 0, 0)),     # fused W3
            ],
            out_specs=pl.BlockSpec((tm, H), lambda i, e, od, na: (i, 0)),
            scratch_shapes=[pltpu.VMEM((tm, 9 * H), jnp.bfloat16),            # shared a1
                            pltpu.VMEM((tm, H), jnp.float32)],                # f32 acc
        ),
        compiler_params=pltpu.CompilerParams(
            dimension_semantics=("parallel", "arbitrary"),
            vmem_limit_bytes=64 * 1024 * 1024),
    )(order_flat, n_active, w_e, x2, w12, w3)

    return out[:N].reshape(B, T, H)


# ---------------- deterministic parameter init (offline weight fusion) -------------------
def init_params(key, hidden, d_ff, num_experts):
    C = N_COEFFS

    def kan_params(k, din, dout):
        k1, k2, k3 = jax.random.split(k, 3)
        base_w = jax.random.normal(k1, (dout, din), jnp.float32) / np.sqrt(din)
        spline_w = jax.random.normal(k2, (dout, din, C), jnp.float32) * 0.1
        spline_scaler = jax.random.normal(k3, (dout, din), jnp.float32) / np.sqrt(din)
        scaled = spline_w * spline_scaler[..., None]               # (dout, din, C)
        bw = base_w.T.astype(jnp.bfloat16)                         # (din, dout)
        sw = jnp.transpose(scaled, (2, 1, 0)).astype(jnp.bfloat16)  # (C, din, dout)
        # Fused layout matching [silu | B_0 .. B_7] activation order: (9*din, dout).
        fused = jnp.concatenate([bw] + [sw[c] for c in range(C)], axis=0)
        return bw, sw, fused

    keys = jax.random.split(key, 1 + num_experts)
    gate_w = jax.random.normal(keys[0], (num_experts, hidden), jnp.float32) / np.sqrt(hidden)

    per = {n: [] for n in ("bw1", "sw1", "bw2", "sw2", "bw3", "sw3", "w12", "w3")}
    for e in range(num_experts):
        k1, k2, k3 = jax.random.split(keys[1 + e], 3)
        bw1, sw1, f1 = kan_params(k1, hidden, d_ff)                # linear1
        bw2, sw2, f2 = kan_params(k2, hidden, d_ff)                # linear2
        bw3, sw3, f3 = kan_params(k3, d_ff, hidden)                # linear3
        per["bw1"].append(bw1); per["sw1"].append(sw1)
        per["bw2"].append(bw2); per["sw2"].append(sw2)
        per["bw3"].append(bw3); per["sw3"].append(sw3)
        per["w12"].append(jnp.concatenate([f1, f2], axis=1))       # (9H, 2F)
        per["w3"].append(f3)                                       # (9F, H)

    out = {k: jnp.stack(v, axis=0) for k, v in per.items()}
    out["gate_w"] = gate_w
    return out


# ---------------- pure-JAX reference (same math, un-fused weights, no Pallas) -------------
def moe_kan_reference(x, params, n_experts_per_token):
    B, T, H = x.shape
    gate_w = params["gate_w"]
    E = gate_w.shape[0]
    w_dense = _route(x, gate_w, n_experts_per_token)               # (B, T, E)

    x2 = x.reshape(-1, H).astype(jnp.float32)
    w2 = w_dense.reshape(-1, E).astype(jnp.float32)
    out = jnp.zeros_like(x2)
    for e in range(E):
        h1 = _kan_apply(x2, params["bw1"][e], params["sw1"][e])
        h2 = _kan_apply(x2, params["bw2"][e], params["sw2"][e])
        y = _kan_apply(h1 * h2, params["bw3"][e], params["sw3"][e])
        out = out + w2[:, e:e + 1] * y
    return out.reshape(B, T, H).astype(x.dtype)


# ---------------- main --------------------------------------------------------------------
if __name__ == "__main__":
    hidden, d_ff = 32, 64
    num_experts, n_experts_per_token = 4, 2
    batch, seq = 2, 8

    key = jax.random.PRNGKey(0)
    kx, kp = jax.random.split(key)
    x = jax.random.normal(kx, (batch, seq, hidden), jnp.float32)
    params = init_params(kp, hidden, d_ff, num_experts)

    out = jax.block_until_ready(moe_kan_forward(x, params, n_experts_per_token))
    ref = jax.block_until_ready(moe_kan_reference(x, params, n_experts_per_token))

    assert out.shape == (batch, seq, hidden)
    max_err = float(jnp.max(jnp.abs(out - ref)))
    # atol + rtol-style tolerance: kernel uses bf16 activations for the MXU dots
    # (weights are bf16 in both paths), so only activation rounding differs.
    tol = 3e-2 + 2e-2 * float(jnp.max(jnp.abs(ref)))
    assert max_err < tol, f"mismatch vs reference: max abs err {max_err} (tol {tol})"

    print("KERNEL_OK")
</pallas_src>

<mosaic_0001>
module attributes {stable_mosaic.version = 11 : i64} {
  func.func @_moe_kan_kernel(%arg0: i32, %arg1: i32, %arg2: memref<4xi32, #tpu.memory_space<smem>>, %arg3: memref<1xi32, #tpu.memory_space<smem>>, %arg4: memref<1x16x1xf32, #tpu.memory_space<vmem>>, %arg5: memref<16x32xf32, #tpu.memory_space<vmem>>, %arg6: memref<1x288x128xbf16, #tpu.memory_space<vmem>>, %arg7: memref<1x576x32xbf16, #tpu.memory_space<vmem>>, %arg8: memref<16x32xf32, #tpu.memory_space<vmem>>, %arg9: memref<16x288xbf16, #tpu.memory_space<vmem>>, %arg10: memref<16x32xf32, #tpu.memory_space<vmem>>) attributes {dimension_semantics = [#tpu.dimension_semantics<parallel>, #tpu.dimension_semantics<arbitrary>], iteration_bounds = array<i64: 1, 4>, scalar_prefetch = 2 : i64, scratch_operands = 2 : i64, tpu.core_type = #tpu.core_type<tc>, window_params = [{transform_indices = @transform_0, window_bounds = array<i64: 1, 16, 1>}, {transform_indices = @transform_1, window_bounds = array<i64: 16, 32>}, {transform_indices = @transform_2, window_bounds = array<i64: 1, 288, 128>}, {transform_indices = @transform_3, window_bounds = array<i64: 1, 576, 32>}, {transform_indices = @transform_4, window_bounds = array<i64: 16, 32>}]} {
    %c0_i32 = arith.constant 0 : i32
    %0 = arith.cmpi eq, %arg1, %c0_i32 : i32
    %1 = arith.extui %0 : i1 to i32
    %c0_i32_0 = arith.constant 0 : i32
    %2 = arith.cmpi ne, %1, %c0_i32_0 : i32
    scf.if %2 {
      %cst = arith.constant 0.000000e+00 : f32
      %11 = vector.broadcast %cst : f32 to vector<16x32xf32>
      %c0 = arith.constant 0 : index
      %c0_3 = arith.constant 0 : index
      %12 = vector.load %arg10[%c0, %c0_3] : memref<16x32xf32, #tpu.memory_space<vmem>>, vector<16x32xf32>
      tpu.vector_store %arg10[%c0, %c0_3], %11 {strides = array<i32>} : memref<16x32xf32, #tpu.memory_space<vmem>>, vector<16x32xf32>,
      %c0_4 = arith.constant 0 : index
      %c0_5 = arith.constant 0 : index
      %13 = vector.load %arg5[%c0_4, %c0_5] : memref<16x32xf32, #tpu.memory_space<vmem>>, vector<16x32xf32>
      %14 = arith.negf %13 : vector<16x32xf32>
      %15 = math.exp %14 : vector<16x32xf32>
      %cst_6 = arith.constant 1.000000e+00 : f32
      %16 = vector.broadcast %cst_6 : f32 to vector<16x32xf32>
      %17 = arith.addf %16, %15 : vector<16x32xf32>
      %18 = arith.divf %16, %17 : vector<16x32xf32>
      %19 = arith.mulf %13, %18 : vector<16x32xf32>
      %20 = arith.truncf %19 : vector<16x32xf32> to vector<16x32xbf16>
      %cst_7 = arith.constant -2.200000e+00 : f32
      %21 = vector.broadcast %cst_7 : f32 to vector<16x32xf32>
      %22 = arith.cmpf oge, %13, %21 : vector<16x32xf32>
      %cst_8 = arith.constant -1.800000e+00 : f32
      %23 = vector.broadcast %cst_8 : f32 to vector<16x32xf32>
      %24 = arith.cmpf oge, %13, %23 : vector<16x32xf32>
      %cst_9 = arith.constant -1.400000e+00 : f32
      %25 = vector.broadcast %cst_9 : f32 to vector<16x32xf32>
      %26 = arith.cmpf oge, %13, %25 : vector<16x32xf32>
      %cst_10 = arith.constant -1.000000e+00 : f32
      %27 = vector.broadcast %cst_10 : f32 to vector<16x32xf32>
      %28 = arith.cmpf oge, %13, %27 : vector<16x32xf32>
      %cst_11 = arith.constant -6.000000e-01 : f32
      %29 = vector.broadcast %cst_11 : f32 to vector<16x32xf32>
      %30 = arith.cmpf oge, %13, %29 : vector<16x32xf32>
      %cst_12 = arith.constant -2.000000e-01 : f32
      %31 = vector.broadcast %cst_12 : f32 to vector<16x32xf32>
      %32 = arith.cmpf oge, %13, %31 : vector<16x32xf32>
      %cst_13 = arith.constant 2.000000e-01 : f32
      %33 = vector.broadcast %cst_13 : f32 to vector<16x32xf32>
      %34 = arith.cmpf oge, %13, %33 : vector<16x32xf32>
      %cst_14 = arith.constant 6.000000e-01 : f32
      %35 = vector.broadcast %cst_14 : f32 to vector<16x32xf32>
      %36 = arith.cmpf oge, %13, %35 : vector<16x32xf32>
      %cst_15 = arith.constant 1.000000e+00 : f32
      %37 = vector.broadcast %cst_15 : f32 to vector<16x32xf32>
      %38 = arith.cmpf oge, %13, %37 : vector<16x32xf32>
      %cst_16 = arith.constant 1.400000e+00 : f32
      %39 = vector.broadcast %cst_16 : f32 to vector<16x32xf32>
      %40 = arith.cmpf oge, %13, %39 : vector<16x32xf32>
      %cst_17 = arith.constant 1.800000e+00 : f32
      %41 = vector.broadcast %cst_17 : f32 to vector<16x32xf32>
      %42 = arith.cmpf oge, %13, %41 : vector<16x32xf32>
      %cst_18 = arith.constant 2.200000e+00 : f32
      %43 = vector.broadcast %cst_18 : f32 to vector<16x32xf32>
      %44 = arith.cmpf oge, %13, %43 : vector<16x32xf32>
      %cst_19 = arith.constant -2.200000e+00 : f32
      %45 = vector.broadcast %cst_19 : f32 to vector<16x32xf32>
      %46 = arith.subf %13, %45 : vector<16x32xf32>
      %cst_20 = arith.constant -1.800000e+00 : f32
      %47 = vector.broadcast %cst_20 : f32 to vector<16x32xf32>
      %48 = arith.subf %13, %47 : vector<16x32xf32>
      %cst_21 = arith.constant -1.400000e+00 : f32
      %49 = vector.broadcast %cst_21 : f32 to vector<16x32xf32>
      %50 = arith.subf %13, %49 : vector<16x32xf32>
      %cst_22 = arith.constant -1.000000e+00 : f32
      %51 = vector.broadcast %cst_22 : f32 to vector<16x32xf32>
      %52 = arith.subf %13, %51 : vector<16x32xf32>
      %cst_23 = arith.constant -6.000000e-01 : f32
      %53 = vector.broadcast %cst_23 : f32 to vector<16x32xf32>
      %54 = arith.subf %13, %53 : vector<16x32xf32>
      %cst_24 = arith.constant -2.000000e-01 : f32
      %55 = vector.broadcast %cst_24 : f32 to vector<16x32xf32>
      %56 = arith.subf %13, %55 : vector<16x32xf32>
      %cst_25 = arith.constant 2.000000e-01 : f32
      %57 = vector.broadcast %cst_25 : f32 to vector<16x32xf32>
      %58 = arith.subf %13, %57 : vector<16x32xf32>
      %cst_26 = arith.constant 6.000000e-01 : f32
      %59 = vector.broadcast %cst_26 : f32 to vector<16x32xf32>
      %60 = arith.subf %13, %59 : vector<16x32xf32>
      %cst_27 = arith.constant 1.000000e+00 : f32
      %61 = vector.broadcast %cst_27 : f32 to vector<16x32xf32>
      %62 = arith.subf %13, %61 : vector<16x32xf32>
      %cst_28 = arith.constant 1.400000e+00 : f32
      %63 = vector.broadcast %cst_28 : f32 to vector<16x32xf32>
      %64 = arith.subf %13, %63 : vector<16x32xf32>
      %cst_29 = arith.constant 1.800000e+00 : f32
      %65 = vector.broadcast %cst_29 : f32 to vector<16x32xf32>
      %66 = arith.subf %13, %65 : vector<16x32xf32>
      %cst_30 = arith.constant 2.200000e+00 : f32
      %67 = vector.broadcast %cst_30 : f32 to vector<16x32xf32>
      %68 = arith.subf %13, %67 : vector<16x32xf32>
      %cst_31 = arith.constant dense<true> : vector<16x32xi1>
      %69 = arith.xori %24, %cst_31 : vector<16x32xi1>
      %70 = arith.andi %22, %69 : vector<16x32xi1>
      %71 = arith.extui %70 : vector<16x32xi1> to vector<16x32xi32>
      %72 = arith.sitofp %71 : vector<16x32xi32> to vector<16x32xf32>
      %cst_32 = arith.constant dense<true> : vector<16x32xi1>
      %73 = arith.xori %26, %cst_32 : vector<16x32xi1>
      %74 = arith.andi %24, %73 : vector<16x32xi1>
      %75 = arith.extui %74 : vector<16x32xi1> to vector<16x32xi32>
      %76 = arith.sitofp %75 : vector<16x32xi32> to vector<16x32xf32>
      %cst_33 = arith.constant dense<true> : vector<16x32xi1>
      %77 = arith.xori %28, %cst_33 : vector<16x32xi1>
      %78 = arith.andi %26, %77 : vector<16x32xi1>
      %79 = arith.extui %78 : vector<16x32xi1> to vector<16x32xi32>
      %80 = arith.sitofp %79 : vector<16x32xi32> to vector<16x32xf32>
      %cst_34 = arith.constant dense<true> : vector<16x32xi1>
      %81 = arith.xori %30, %cst_34 : vector<16x32xi1>
      %82 = arith.andi %28, %81 : vector<16x32xi1>
      %83 = arith.extui %82 : vector<16x32xi1> to vector<16x32xi32>
      %84 = arith.sitofp %83 : vector<16x32xi32> to vector<16x32xf32>
      %cst_35 = arith.constant dense<true> : vector<16x32xi1>
      %85 = arith.xori %32, %cst_35 : vector<16x32xi1>
      %86 = arith.andi %30, %85 : vector<16x32xi1>
      %87 = arith.extui %86 : vector<16x32xi1> to vector<16x32xi32>
      %88 = arith.sitofp %87 : vector<16x32xi32> to vector<16x32xf32>
      %cst_36 = arith.constant dense<true> : vector<16x32xi1>
      %89 = arith.xori %34, %cst_36 : vector<16x32xi1>
      %90 = arith.andi %32, %89 : vector<16x32xi1>
      %91 = arith.extui %90 : vector<16x32xi1> to vector<16x32xi32>
      %92 = arith.sitofp %91 : vector<16x32xi32> to vector<16x32xf32>
      %cst_37 = arith.constant dense<true> : vector<16x32xi1>
      %93 = arith.xori %36, %cst_37 : vector<16x32xi1>
      %94 = arith.andi %34, %93 : vector<16x32xi1>
      %95 = arith.extui %94 : vector<16x32xi1> to vector<16x32xi32>
      %96 = arith.sitofp %95 : vector<16x32xi32> to vector<16x32xf32>
      %cst_38 = arith.constant dense<true> : vector<16x32xi1>
      %97 = arith.xori %38, %cst_38 : vector<16x32xi1>
      %98 = arith.andi %36, %97 : vector<16x32xi1>
      %99 = arith.extui %98 : vector<16x32xi1> to vector<16x32xi32>
      %100 = arith.sitofp %99 : vector<16x32xi32> to vector<16x32xf32>
      %cst_39 = arith.constant dense<true> : vector<16x32xi1>
      %101 = arith.xori %40, %cst_39 : vector<16x32xi1>
      %102 = arith.andi %38, %101 : vector<16x32xi1>
      %103 = arith.extui %102 : vector<16x32xi1> to vector<16x32xi32>
      %104 = arith.sitofp %103 : vector<16x32xi32> to vector<16x32xf32>
      %cst_40 = arith.constant dense<true> : vector<16x32xi1>
      %105 = arith.xori %42, %cst_40 : vector<16x32xi1>
      %106 = arith.andi %40, %105 : vector<16x32xi1>
      %107 = arith.extui %106 : vector<16x32xi1> to vector<16x32xi32>
      %108 = arith.sitofp %107 : vector<16x32xi32> to vector<16x32xf32>
      %cst_41 = arith.constant dense<true> : vector<16x32xi1>
      %109 = arith.xori %44, %cst_41 : vector<16x32xi1>
      %110 = arith.andi %42, %109 : vector<16x32xi1>
      %111 = arith.extui %110 : vector<16x32xi1> to vector<16x32xi32>
      %112 = arith.sitofp %111 : vector<16x32xi32> to vector<16x32xf32>
      %cst_42 = arith.constant 2.500000e+00 : f32
      %113 = vector.broadcast %cst_42 : f32 to vector<16x32xf32>
      %114 = arith.mulf %46, %113 : vector<16x32xf32>
      %115 = arith.mulf %114, %72 : vector<16x32xf32>
      %cst_43 = arith.constant -2.500000e+00 : f32
      %116 = vector.broadcast %cst_43 : f32 to vector<16x32xf32>
      %117 = arith.mulf %50, %116 : vector<16x32xf32>
      %118 = arith.mulf %117, %76 : vector<16x32xf32>
      %119 = arith.addf %115, %118 : vector<16x32xf32>
      %cst_44 = arith.constant 2.500000e+00 : f32
      %120 = vector.broadcast %cst_44 : f32 to vector<16x32xf32>
      %121 = arith.mulf %48, %120 : vector<16x32xf32>
      %122 = arith.mulf %121, %76 : vector<16x32xf32>
      %cst_45 = arith.constant -2.500000e+00 : f32
      %123 = vector.broadcast %cst_45 : f32 to vector<16x32xf32>
      %124 = arith.mulf %52, %123 : vector<16x32xf32>
      %125 = arith.mulf %124, %80 : vector<16x32xf32>
      %126 = arith.addf %122, %125 : vector<16x32xf32>
      %cst_46 = arith.constant 2.500000e+00 : f32
      %127 = vector.broadcast %cst_46 : f32 to vector<16x32xf32>
      %128 = arith.mulf %50, %127 : vector<16x32xf32>
      %129 = arith.mulf %128, %80 : vector<16x32xf32>
      %cst_47 = arith.constant -2.500000e+00 : f32
      %130 = vector.broadcast %cst_47 : f32 to vector<16x32xf32>
      %131 = arith.mulf %54, %130 : vector<16x32xf32>
      %132 = arith.mulf %131, %84 : vector<16x32xf32>
      %133 = arith.addf %129, %132 : vector<16x32xf32>
      %cst_48 = arith.constant 2.500000e+00 : f32
      %134 = vector.broadcast %cst_48 : f32 to vector<16x32xf32>
      %135 = arith.mulf %52, %134 : vector<16x32xf32>
      %136 = arith.mulf %135, %84 : vector<16x32xf32>
      %cst_49 = arith.constant -2.500000e+00 : f32
      %137 = vector.broadcast %cst_49 : f32 to vector<16x32xf32>
      %138 = arith.mulf %56, %137 : vector<16x32xf32>
      %139 = arith.mulf %138, %88 : vector<16x32xf32>
      %140 = arith.addf %136, %139 : vector<16x32xf32>
      %cst_50 = arith.constant 2.500000e+00 : f32
      %141 = vector.broadcast %cst_50 : f32 to vector<16x32xf32>
      %142 = arith.mulf %54, %141 : vector<16x32xf32>
      %143 = arith.mulf %142, %88 : vector<16x32xf32>
      %cst_51 = arith.constant -2.500000e+00 : f32
      %144 = vector.broadcast %cst_51 : f32 to vector<16x32xf32>
      %145 = arith.mulf %58, %144 : vector<16x32xf32>
      %146 = arith.mulf %145, %92 : vector<16x32xf32>
      %147 = arith.addf %143, %146 : vector<16x32xf32>
      %cst_52 = arith.constant 2.500000e+00 : f32
      %148 = vector.broadcast %cst_52 : f32 to vector<16x32xf32>
      %149 = arith.mulf %56, %148 : vector<16x32xf32>
      %150 = arith.mulf %149, %92 : vector<16x32xf32>
      %cst_53 = arith.constant -2.500000e+00 : f32
      %151 = vector.broadcast %cst_53 : f32 to vector<16x32xf32>
      %152 = arith.mulf %60, %151 : vector<16x32xf32>
      %153 = arith.mulf %152, %96 : vector<16x32xf32>
      %154 = arith.addf %150, %153 : vector<16x32xf32>
      %cst_54 = arith.constant 2.500000e+00 : f32
      %155 = vector.broadcast %cst_54 : f32 to vector<16x32xf32>
      %156 = arith.mulf %58, %155 : vector<16x32xf32>
      %157 = arith.mulf %156, %96 : vector<16x32xf32>
      %cst_55 = arith.constant -2.500000e+00 : f32
      %158 = vector.broadcast %cst_55 : f32 to vector<16x32xf32>
      %159 = arith.mulf %62, %158 : vector<16x32xf32>
      %160 = arith.mulf %159, %100 : vector<16x32xf32>
      %161 = arith.addf %157, %160 : vector<16x32xf32>
      %cst_56 = arith.constant 2.500000e+00 : f32
      %162 = vector.broadcast %cst_56 : f32 to vector<16x32xf32>
      %163 = arith.mulf %60, %162 : vector<16x32xf32>
      %164 = arith.mulf %163, %100 : vector<16x32xf32>
      %cst_57 = arith.constant -2.500000e+00 : f32
      %165 = vector.broadcast %cst_57 : f32 to vector<16x32xf32>
      %166 = arith.mulf %64, %165 : vector<16x32xf32>
      %167 = arith.mulf %166, %104 : vector<16x32xf32>
      %168 = arith.addf %164, %167 : vector<16x32xf32>
      %cst_58 = arith.constant 2.500000e+00 : f32
      %169 = vector.broadcast %cst_58 : f32 to vector<16x32xf32>
      %170 = arith.mulf %62, %169 : vector<16x32xf32>
      %171 = arith.mulf %170, %104 : vector<16x32xf32>
      %cst_59 = arith.constant -2.500000e+00 : f32
      %172 = vector.broadcast %cst_59 : f32 to vector<16x32xf32>
      %173 = arith.mulf %66, %172 : vector<16x32xf32>
      %174 = arith.mulf %173, %108 : vector<16x32xf32>
      %175 = arith.addf %171, %174 : vector<16x32xf32>
      %cst_60 = arith.constant 2.500000e+00 : f32
      %176 = vector.broadcast %cst_60 : f32 to vector<16x32xf32>
      %177 = arith.mulf %64, %176 : vector<16x32xf32>
      %178 = arith.mulf %177, %108 : vector<16x32xf32>
      %cst_61 = arith.constant -2.500000e+00 : f32
      %179 = vector.broadcast %cst_61 : f32 to vector<16x32xf32>
      %180 = arith.mulf %68, %179 : vector<16x32xf32>
      %181 = arith.mulf %180, %112 : vector<16x32xf32>
      %182 = arith.addf %178, %181 : vector<16x32xf32>
      %cst_62 = arith.constant 1.250000e+00 : f32
      %183 = vector.broadcast %cst_62 : f32 to vector<16x32xf32>
      %184 = arith.mulf %46, %183 : vector<16x32xf32>
      %185 = arith.mulf %184, %119 : vector<16x32xf32>
      %cst_63 = arith.constant -1.250000e+00 : f32
      %186 = vector.broadcast %cst_63 : f32 to vector<16x32xf32>
      %187 = arith.mulf %52, %186 : vector<16x32xf32>
      %188 = arith.mulf %187, %126 : vector<16x32xf32>
      %189 = arith.addf %185, %188 : vector<16x32xf32>
      %cst_64 = arith.constant 1.250000e+00 : f32
      %190 = vector.broadcast %cst_64 : f32 to vector<16x32xf32>
      %191 = arith.mulf %48, %190 : vector<16x32xf32>
      %192 = arith.mulf %191, %126 : vector<16x32xf32>
      %cst_65 = arith.constant -1.250000e+00 : f32
      %193 = vector.broadcast %cst_65 : f32 to vector<16x32xf32>
      %194 = arith.mulf %54, %193 : vector<16x32xf32>
      %195 = arith.mulf %194, %133 : vector<16x32xf32>
      %196 = arith.addf %192, %195 : vector<16x32xf32>
      %cst_66 = arith.constant 1.250000e+00 : f32
      %197 = vector.broadcast %cst_66 : f32 to vector<16x32xf32>
      %198 = arith.mulf %50, %197 : vector<16x32xf32>
      %199 = arith.mulf %198, %133 : vector<16x32xf32>
      %cst_67 = arith.constant -1.250000e+00 : f32
      %200 = vector.broadcast %cst_67 : f32 to vector<16x32xf32>
      %201 = arith.mulf %56, %200 : vector<16x32xf32>
      %202 = arith.mulf %201, %140 : vector<16x32xf32>
      %203 = arith.addf %199, %202 : vector<16x32xf32>
      %cst_68 = arith.constant 1.250000e+00 : f32
      %204 = vector.broadcast %cst_68 : f32 to vector<16x32xf32>
      %205 = arith.mulf %52, %204 : vector<16x32xf32>
      %206 = arith.mulf %205, %140 : vector<16x32xf32>
      %cst_69 = arith.constant -1.250000e+00 : f32
      %207 = vector.broadcast %cst_69 : f32 to vector<16x32xf32>
      %208 = arith.mulf %58, %207 : vector<16x32xf32>
      %209 = arith.mulf %208, %147 : vector<16x32xf32>
      %210 = arith.addf %206, %209 : vector<16x32xf32>
      %cst_70 = arith.constant 1.250000e+00 : f32
      %211 = vector.broadcast %cst_70 : f32 to vector<16x32xf32>
      %212 = arith.mulf %54, %211 : vector<16x32xf32>
      %213 = arith.mulf %212, %147 : vector<16x32xf32>
      %cst_71 = arith.constant -1.250000e+00 : f32
      %214 = vector.broadcast %cst_71 : f32 to vector<16x32xf32>
      %215 = arith.mulf %60, %214 : vector<16x32xf32>
      %216 = arith.mulf %215, %154 : vector<16x32xf32>
      %217 = arith.addf %213, %216 : vector<16x32xf32>
      %cst_72 = arith.constant 1.250000e+00 : f32
      %218 = vector.broadcast %cst_72 : f32 to vector<16x32xf32>
      %219 = arith.mulf %56, %218 : vector<16x32xf32>
      %220 = arith.mulf %219, %154 : vector<16x32xf32>
      %cst_73 = arith.constant -1.250000e+00 : f32
      %221 = vector.broadcast %cst_73 : f32 to vector<16x32xf32>
      %222 = arith.mulf %62, %221 : vector<16x32xf32>
      %223 = arith.mulf %222, %161 : vector<16x32xf32>
      %224 = arith.addf %220, %223 : vector<16x32xf32>
      %cst_74 = arith.constant 1.250000e+00 : f32
      %225 = vector.broadcast %cst_74 : f32 to vector<16x32xf32>
      %226 = arith.mulf %58, %225 : vector<16x32xf32>
      %227 = arith.mulf %226, %161 : vector<16x32xf32>
      %cst_75 = arith.constant -1.250000e+00 : f32
      %228 = vector.broadcast %cst_75 : f32 to vector<16x32xf32>
      %229 = arith.mulf %64, %228 : vector<16x32xf32>
      %230 = arith.mulf %229, %168 : vector<16x32xf32>
      %231 = arith.addf %227, %230 : vector<16x32xf32>
      %cst_76 = arith.constant 1.250000e+00 : f32
      %232 = vector.broadcast %cst_76 : f32 to vector<16x32xf32>
      %233 = arith.mulf %60, %232 : vector<16x32xf32>
      %234 = arith.mulf %233, %168 : vector<16x32xf32>
      %cst_77 = arith.constant -1.250000e+00 : f32
      %235 = vector.broadcast %cst_77 : f32 to vector<16x32xf32>
      %236 = arith.mulf %66, %235 : vector<16x32xf32>
      %237 = arith.mulf %236, %175 : vector<16x32xf32>
      %238 = arith.addf %234, %237 : vector<16x32xf32>
      %cst_78 = arith.constant 1.250000e+00 : f32
      %239 = vector.broadcast %cst_78 : f32 to vector<16x32xf32>
      %240 = arith.mulf %62, %239 : vector<16x32xf32>
      %241 = arith.mulf %240, %175 : vector<16x32xf32>
      %cst_79 = arith.constant -1.250000e+00 : f32
      %242 = vector.broadcast %cst_79 : f32 to vector<16x32xf32>
      %243 = arith.mulf %68, %242 : vector<16x32xf32>
      %244 = arith.mulf %243, %182 : vector<16x32xf32>
      %245 = arith.addf %241, %244 : vector<16x32xf32>
      %cst_80 = arith.constant 0.833333313 : f32
      %246 = vector.broadcast %cst_80 : f32 to vector<16x32xf32>
      %247 = arith.mulf %46, %246 : vector<16x32xf32>
      %248 = arith.mulf %247, %189 : vector<16x32xf32>
      %cst_81 = arith.constant -0.833333313 : f32
      %249 = vector.broadcast %cst_81 : f32 to vector<16x32xf32>
      %250 = arith.mulf %54, %249 : vector<16x32xf32>
      %251 = arith.mulf %250, %196 : vector<16x32xf32>
      %252 = arith.addf %248, %251 : vector<16x32xf32>
      %cst_82 = arith.constant 0.833333313 : f32
      %253 = vector.broadcast %cst_82 : f32 to vector<16x32xf32>
      %254 = arith.mulf %48, %253 : vector<16x32xf32>
      %255 = arith.mulf %254, %196 : vector<16x32xf32>
      %cst_83 = arith.constant -0.833333313 : f32
      %256 = vector.broadcast %cst_83 : f32 to vector<16x32xf32>
      %257 = arith.mulf %56, %256 : vector<16x32xf32>
      %258 = arith.mulf %257, %203 : vector<16x32xf32>
      %259 = arith.addf %255, %258 : vector<16x32xf32>
      %cst_84 = arith.constant 0.833333313 : f32
      %260 = vector.broadcast %cst_84 : f32 to vector<16x32xf32>
      %261 = arith.mulf %50, %260 : vector<16x32xf32>
      %262 = arith.mulf %261, %203 : vector<16x32xf32>
      %cst_85 = arith.constant -0.833333313 : f32
      %263 = vector.broadcast %cst_85 : f32 to vector<16x32xf32>
      %264 = arith.mulf %58, %263 : vector<16x32xf32>
      %265 = arith.mulf %264, %210 : vector<16x32xf32>
      %266 = arith.addf %262, %265 : vector<16x32xf32>
      %cst_86 = arith.constant 0.833333313 : f32
      %267 = vector.broadcast %cst_86 : f32 to vector<16x32xf32>
      %268 = arith.mulf %52, %267 : vector<16x32xf32>
      %269 = arith.mulf %268, %210 : vector<16x32xf32>
      %cst_87 = arith.constant -0.833333313 : f32
      %270 = vector.broadcast %cst_87 : f32 to vector<16x32xf32>
      %271 = arith.mulf %60, %270 : vector<16x32xf32>
      %272 = arith.mulf %271, %217 : vector<16x32xf32>
      %273 = arith.addf %269, %272 : vector<16x32xf32>
      %cst_88 = arith.constant 0.833333313 : f32
      %274 = vector.broadcast %cst_88 : f32 to vector<16x32xf32>
      %275 = arith.mulf %54, %274 : vector<16x32xf32>
      %276 = arith.mulf %275, %217 : vector<16x32xf32>
      %cst_89 = arith.constant -0.833333313 : f32
      %277 = vector.broadcast %cst_89 : f32 to vector<16x32xf32>
      %278 = arith.mulf %62, %277 : vector<16x32xf32>
      %279 = arith.mulf %278, %224 : vector<16x32xf32>
      %280 = arith.addf %276, %279 : vector<16x32xf32>
      %cst_90 = arith.constant 0.833333313 : f32
      %281 = vector.broadcast %cst_90 : f32 to vector<16x32xf32>
      %282 = arith.mulf %56, %281 : vector<16x32xf32>
      %283 = arith.mulf %282, %224 : vector<16x32xf32>
      %cst_91 = arith.constant -0.833333313 : f32
      %284 = vector.broadcast %cst_91 : f32 to vector<16x32xf32>
      %285 = arith.mulf %64, %284 : vector<16x32xf32>
      %286 = arith.mulf %285, %231 : vector<16x32xf32>
      %287 = arith.addf %283, %286 : vector<16x32xf32>
      %cst_92 = arith.constant 0.833333313 : f32
      %288 = vector.broadcast %cst_92 : f32 to vector<16x32xf32>
      %289 = arith.mulf %58, %288 : vector<16x32xf32>
      %290 = arith.mulf %289, %231 : vector<16x32xf32>
      %cst_93 = arith.constant -0.833333313 : f32
      %291 = vector.broadcast %cst_93 : f32 to vector<16x32xf32>
      %292 = arith.mulf %66, %291 : vector<16x32xf32>
      %293 = arith.mulf %292, %238 : vector<16x32xf32>
      %294 = arith.addf %290, %293 : vector<16x32xf32>
      %cst_94 = arith.constant 0.833333313 : f32
      %295 = vector.broadcast %cst_94 : f32 to vector<16x32xf32>
      %296 = arith.mulf %60, %295 : vector<16x32xf32>
      %297 = arith.mulf %296, %238 : vector<16x32xf32>
      %cst_95 = arith.constant -0.833333313 : f32
      %298 = vector.broadcast %cst_95 : f32 to vector<16x32xf32>
      %299 = arith.mulf %68, %298 : vector<16x32xf32>
      %300 = arith.mulf %299, %245 : vector<16x32xf32>
      %301 = arith.addf %297, %300 : vector<16x32xf32>
      %302 = arith.truncf %252 : vector<16x32xf32> to vector<16x32xbf16>
      %303 = arith.truncf %259 : vector<16x32xf32> to vector<16x32xbf16>
      %304 = arith.truncf %266 : vector<16x32xf32> to vector<16x32xbf16>
      %305 = arith.truncf %273 : vector<16x32xf32> to vector<16x32xbf16>
      %306 = arith.truncf %280 : vector<16x32xf32> to vector<16x32xbf16>
      %307 = arith.truncf %287 : vector<16x32xf32> to vector<16x32xbf16>
      %308 = arith.truncf %294 : vector<16x32xf32> to vector<16x32xbf16>
      %309 = arith.truncf %301 : vector<16x32xf32> to vector<16x32xbf16>
      %310 = tpu.concatenate %20, %302, %303, %304, %305, %306, %307, %308, %309 in 1 : vector<16x32xbf16>, vector<16x32xbf16>, vector<16x32xbf16>, vector<16x32xbf16>, vector<16x32xbf16>, vector<16x32xbf16>, vector<16x32xbf16>, vector<16x32xbf16>, vector<16x32xbf16> -> vector<16x288xbf16>
      %c0_96 = arith.constant 0 : index
      %c0_97 = arith.constant 0 : index
      %311 = vector.load %arg9[%c0_96, %c0_97] : memref<16x288xbf16, #tpu.memory_space<vmem>>, vector<16x288xbf16>
      tpu.vector_store %arg9[%c0_96, %c0_97], %310 {strides = array<i32>} : memref<16x288xbf16, #tpu.memory_space<vmem>>, vector<16x288xbf16>,
    } else {
    }
    %3 = arith.index_cast %arg0 : i32 to index
    %4 = memref.load %arg3[%3] : memref<1xi32, #tpu.memory_space<smem>>
    %5 = arith.cmpi slt, %arg1, %4 : i32
    %6 = arith.extui %5 : i1 to i32
    %c0_i32_1 = arith.constant 0 : i32
    %7 = arith.cmpi ne, %6, %c0_i32_1 : i32
    scf.if %7 {
      %c0 = arith.constant 0 : index
      %c0_3 = arith.constant 0 : index
      %11 = vector.load %arg9[%c0, %c0_3] : memref<16x288xbf16, #tpu.memory_space<vmem>>, vector<16x288xbf16>
      %c0_4 = arith.constant 0 : index
      %c0_5 = arith.constant 0 : index
      %c0_6 = arith.constant 0 : index
      %12 = vector.load %arg6[%c0_4, %c0_5, %c0_6] : memref<1x288x128xbf16, #tpu.memory_space<vmem>>, vector<1x288x128xbf16>
      %13 = vector.shape_cast %12 : vector<1x288x128xbf16> to vector<288x128xbf16>
      %cst = arith.constant dense<0.000000e+00> : vector<16x128xf32>
      %14 = tpu.matmul %11, %13, %cst {dimension_numbers = #tpu.dot_dimension_numbers<[1], [0], [0], [1], [0, 0, 1, 1], [], []>} : vector<16x288xbf16>, vector<288x128xbf16>, vector<16x128xf32> -> vector<16x128xf32>
      %15 = vector.extract_strided_slice %14 {offsets = [0, 0], sizes = [16, 64], strides = [1, 1]} : vector<16x128xf32> to vector<16x64xf32>
      %16 = vector.extract_strided_slice %14 {offsets = [0, 64], sizes = [16, 64], strides = [1, 1]} : vector<16x128xf32> to vector<16x64xf32>
      %17 = arith.mulf %15, %16 : vector<16x64xf32>
      %18 = arith.negf %17 : vector<16x64xf32>
      %19 = math.exp %18 : vector<16x64xf32>
      %cst_7 = arith.constant 1.000000e+00 : f32
      %20 = vector.broadcast %cst_7 : f32 to vector<16x64xf32>
      %21 = arith.addf %20, %19 : vector<16x64xf32>
      %22 = arith.divf %20, %21 : vector<16x64xf32>
      %23 = arith.mulf %17, %22 : vector<16x64xf32>
      %24 = arith.truncf %23 : vector<16x64xf32> to vector<16x64xbf16>
      %cst_8 = arith.constant -2.200000e+00 : f32
      %25 = vector.broadcast %cst_8 : f32 to vector<16x64xf32>
      %26 = arith.cmpf oge, %17, %25 : vector<16x64xf32>
      %cst_9 = arith.constant -1.800000e+00 : f32
      %27 = vector.broadcast %cst_9 : f32 to vector<16x64xf32>
      %28 = arith.cmpf oge, %17, %27 : vector<16x64xf32>
      %cst_10 = arith.constant -1.400000e+00 : f32
      %29 = vector.broadcast %cst_10 : f32 to vector<16x64xf32>
      %30 = arith.cmpf oge, %17, %29 : vector<16x64xf32>
      %cst_11 = arith.constant -1.000000e+00 : f32
      %31 = vector.broadcast %cst_11 : f32 to vector<16x64xf32>
      %32 = arith.cmpf oge, %17, %31 : vector<16x64xf32>
      %cst_12 = arith.constant -6.000000e-01 : f32
      %33 = vector.broadcast %cst_12 : f32 to vector<16x64xf32>
      %34 = arith.cmpf oge, %17, %33 : vector<16x64xf32>
      %cst_13 = arith.constant -2.000000e-01 : f32
      %35 = vector.broadcast %cst_13 : f32 to vector<16x64xf32>
      %36 = arith.cmpf oge, %17, %35 : vector<16x64xf32>
      %cst_14 = arith.constant 2.000000e-01 : f32
      %37 = vector.broadcast %cst_14 : f32 to vector<16x64xf32>
      %38 = arith.cmpf oge, %17, %37 : vector<16x64xf32>
      %cst_15 = arith.constant 6.000000e-01 : f32
      %39 = vector.broadcast %cst_15 : f32 to vector<16x64xf32>
      %40 = arith.cmpf oge, %17, %39 : vector<16x64xf32>
      %cst_16 = arith.constant 1.000000e+00 : f32
      %41 = vector.broadcast %cst_16 : f32 to vector<16x64xf32>
      %42 = arith.cmpf oge, %17, %41 : vector<16x64xf32>
      %cst_17 = arith.constant 1.400000e+00 : f32
      %43 = vector.broadcast %cst_17 : f32 to vector<16x64xf32>
      %44 = arith.cmpf oge, %17, %43 : vector<16x64xf32>
      %cst_18 = arith.constant 1.800000e+00 : f32
      %45 = vector.broadcast %cst_18 : f32 to vector<16x64xf32>
      %46 = arith.cmpf oge, %17, %45 : vector<16x64xf32>
      %cst_19 = arith.constant 2.200000e+00 : f32
      %47 = vector.broadcast %cst_19 : f32 to vector<16x64xf32>
      %48 = arith.cmpf oge, %17, %47 : vector<16x64xf32>
      %cst_20 = arith.constant -2.200000e+00 : f32
      %49 = vector.broadcast %cst_20 : f32 to vector<16x64xf32>
      %50 = arith.subf %17, %49 : vector<16x64xf32>
      %cst_21 = arith.constant -1.800000e+00 : f32
      %51 = vector.broadcast %cst_21 : f32 to vector<16x64xf32>
      %52 = arith.subf %17, %51 : vector<16x64xf32>
      %cst_22 = arith.constant -1.400000e+00 : f32
      %53 = vector.broadcast %cst_22 : f32 to vector<16x64xf32>
      %54 = arith.subf %17, %53 : vector<16x64xf32>
      %cst_23 = arith.constant -1.000000e+00 : f32
      %55 = vector.broadcast %cst_23 : f32 to vector<16x64xf32>
      %56 = arith.subf %17, %55 : vector<16x64xf32>
      %cst_24 = arith.constant -6.000000e-01 : f32
      %57 = vector.broadcast %cst_24 : f32 to vector<16x64xf32>
      %58 = arith.subf %17, %57 : vector<16x64xf32>
      %cst_25 = arith.constant -2.000000e-01 : f32
      %59 = vector.broadcast %cst_25 : f32 to vector<16x64xf32>
      %60 = arith.subf %17, %59 : vector<16x64xf32>
      %cst_26 = arith.constant 2.000000e-01 : f32
      %61 = vector.broadcast %cst_26 : f32 to vector<16x64xf32>
      %62 = arith.subf %17, %61 : vector<16x64xf32>
      %cst_27 = arith.constant 6.000000e-01 : f32
      %63 = vector.broadcast %cst_27 : f32 to vector<16x64xf32>
      %64 = arith.subf %17, %63 : vector<16x64xf32>
      %cst_28 = arith.constant 1.000000e+00 : f32
      %65 = vector.broadcast %cst_28 : f32 to vector<16x64xf32>
      %66 = arith.subf %17, %65 : vector<16x64xf32>
      %cst_29 = arith.constant 1.400000e+00 : f32
      %67 = vector.broadcast %cst_29 : f32 to vector<16x64xf32>
      %68 = arith.subf %17, %67 : vector<16x64xf32>
      %cst_30 = arith.constant 1.800000e+00 : f32
      %69 = vector.broadcast %cst_30 : f32 to vector<16x64xf32>
      %70 = arith.subf %17, %69 : vector<16x64xf32>
      %cst_31 = arith.constant 2.200000e+00 : f32
      %71 = vector.broadcast %cst_31 : f32 to vector<16x64xf32>
      %72 = arith.subf %17, %71 : vector<16x64xf32>
      %cst_32 = arith.constant dense<true> : vector<16x64xi1>
      %73 = arith.xori %28, %cst_32 : vector<16x64xi1>
      %74 = arith.andi %26, %73 : vector<16x64xi1>
      %75 = arith.extui %74 : vector<16x64xi1> to vector<16x64xi32>
      %76 = arith.sitofp %75 : vector<16x64xi32> to vector<16x64xf32>
      %cst_33 = arith.constant dense<true> : vector<16x64xi1>
      %77 = arith.xori %30, %cst_33 : vector<16x64xi1>
      %78 = arith.andi %28, %77 : vector<16x64xi1>
      %79 = arith.extui %78 : vector<16x64xi1> to vector<16x64xi32>
      %80 = arith.sitofp %79 : vector<16x64xi32> to vector<16x64xf32>
      %cst_34 = arith.constant dense<true> : vector<16x64xi1>
      %81 = arith.xori %32, %cst_34 : vector<16x64xi1>
      %82 = arith.andi %30, %81 : vector<16x64xi1>
      %83 = arith.extui %82 : vector<16x64xi1> to vector<16x64xi32>
      %84 = arith.sitofp %83 : vector<16x64xi32> to vector<16x64xf32>
      %cst_35 = arith.constant dense<true> : vector<16x64xi1>
      %85 = arith.xori %34, %cst_35 : vector<16x64xi1>
      %86 = arith.andi %32, %85 : vector<16x64xi1>
      %87 = arith.extui %86 : vector<16x64xi1> to vector<16x64xi32>
      %88 = arith.sitofp %87 : vector<16x64xi32> to vector<16x64xf32>
      %cst_36 = arith.constant dense<true> : vector<16x64xi1>
      %89 = arith.xori %36, %cst_36 : vector<16x64xi1>
      %90 = arith.andi %34, %89 : vector<16x64xi1>
      %91 = arith.extui %90 : vector<16x64xi1> to vector<16x64xi32>
      %92 = arith.sitofp %91 : vector<16x64xi32> to vector<16x64xf32>
      %cst_37 = arith.constant dense<true> : vector<16x64xi1>
      %93 = arith.xori %38, %cst_37 : vector<16x64xi1>
      %94 = arith.andi %36, %93 : vector<16x64xi1>
      %95 = arith.extui %94 : vector<16x64xi1> to vector<16x64xi32>
      %96 = arith.sitofp %95 : vector<16x64xi32> to vector<16x64xf32>
      %cst_38 = arith.constant dense<true> : vector<16x64xi1>
      %97 = arith.xori %40, %cst_38 : vector<16x64xi1>
      %98 = arith.andi %38, %97 : vector<16x64xi1>
      %99 = arith.extui %98 : vector<16x64xi1> to vector<16x64xi32>
      %100 = arith.sitofp %99 : vector<16x64xi32> to vector<16x64xf32>
      %cst_39 = arith.constant dense<true> : vector<16x64xi1>
      %101 = arith.xori %42, %cst_39 : vector<16x64xi1>
      %102 = arith.andi %40, %101 : vector<16x64xi1>
      %103 = arith.extui %102 : vector<16x64xi1> to vector<16x64xi32>
      %104 = arith.sitofp %103 : vector<16x64xi32> to vector<16x64xf32>
      %cst_40 = arith.constant dense<true> : vector<16x64xi1>
      %105 = arith.xori %44, %cst_40 : vector<16x64xi1>
      %106 = arith.andi %42, %105 : vector<16x64xi1>
      %107 = arith.extui %106 : vector<16x64xi1> to vector<16x64xi32>
      %108 = arith.sitofp %107 : vector<16x64xi32> to vector<16x64xf32>
      %cst_41 = arith.constant dense<true> : vector<16x64xi1>
      %109 = arith.xori %46, %cst_41 : vector<16x64xi1>
      %110 = arith.andi %44, %109 : vector<16x64xi1>
      %111 = arith.extui %110 : vector<16x64xi1> to vector<16x64xi32>
      %112 = arith.sitofp %111 : vector<16x64xi32> to vector<16x64xf32>
      %cst_42 = arith.constant dense<true> : vector<16x64xi1>
      %113 = arith.xori %48, %cst_42 : vector<16x64xi1>
      %114 = arith.andi %46, %113 : vector<16x64xi1>
      %115 = arith.extui %114 : vector<16x64xi1> to vector<16x64xi32>
      %116 = arith.sitofp %115 : vector<16x64xi32> to vector<16x64xf32>
      %cst_43 = arith.constant 2.500000e+00 : f32
      %117 = vector.broadcast %cst_43 : f32 to vector<16x64xf32>
      %118 = arith.mulf %50, %117 : vector<16x64xf32>
      %119 = arith.mulf %118, %76 : vector<16x64xf32>
      %cst_44 = arith.constant -2.500000e+00 : f32
      %120 = vector.broadcast %cst_44 : f32 to vector<16x64xf32>
      %121 = arith.mulf %54, %120 : vector<16x64xf32>
      %122 = arith.mulf %121, %80 : vector<16x64xf32>
      %123 = arith.addf %119, %122 : vector<16x64xf32>
      %cst_45 = arith.constant 2.500000e+00 : f32
      %124 = vector.broadcast %cst_45 : f32 to vector<16x64xf32>
      %125 = arith.mulf %52, %124 : vector<16x64xf32>
      %126 = arith.mulf %125, %80 : vector<16x64xf32>
      %cst_46 = arith.constant -2.500000e+00 : f32
      %127 = vector.broadcast %cst_46 : f32 to vector<16x64xf32>
      %128 = arith.mulf %56, %127 : vector<16x64xf32>
      %129 = arith.mulf %128, %84 : vector<16x64xf32>
      %130 = arith.addf %126, %129 : vector<16x64xf32>
      %cst_47 = arith.constant 2.500000e+00 : f32
      %131 = vector.broadcast %cst_47 : f32 to vector<16x64xf32>
      %132 = arith.mulf %54, %131 : vector<16x64xf32>
      %133 = arith.mulf %132, %84 : vector<16x64xf32>
      %cst_48 = arith.constant -2.500000e+00 : f32
      %134 = vector.broadcast %cst_48 : f32 to vector<16x64xf32>
      %135 = arith.mulf %58, %134 : vector<16x64xf32>
      %136 = arith.mulf %135, %88 : vector<16x64xf32>
      %137 = arith.addf %133, %136 : vector<16x64xf32>
      %cst_49 = arith.constant 2.500000e+00 : f32
      %138 = vector.broadcast %cst_49 : f32 to vector<16x64xf32>
      %139 = arith.mulf %56, %138 : vector<16x64xf32>
      %140 = arith.mulf %139, %88 : vector<16x64xf32>
      %cst_50 = arith.constant -2.500000e+00 : f32
      %141 = vector.broadcast %cst_50 : f32 to vector<16x64xf32>
      %142 = arith.mulf %60, %141 : vector<16x64xf32>
      %143 = arith.mulf %142, %92 : vector<16x64xf32>
      %144 = arith.addf %140, %143 : vector<16x64xf32>
      %cst_51 = arith.constant 2.500000e+00 : f32
      %145 = vector.broadcast %cst_51 : f32 to vector<16x64xf32>
      %146 = arith.mulf %58, %145 : vector<16x64xf32>
      %147 = arith.mulf %146, %92 : vector<16x64xf32>
      %cst_52 = arith.constant -2.500000e+00 : f32
      %148 = vector.broadcast %cst_52 : f32 to vector<16x64xf32>
      %149 = arith.mulf %62, %148 : vector<16x64xf32>
      %150 = arith.mulf %149, %96 : vector<16x64xf32>
      %151 = arith.addf %147, %150 : vector<16x64xf32>
      %cst_53 = arith.constant 2.500000e+00 : f32
      %152 = vector.broadcast %cst_53 : f32 to vector<16x64xf32>
      %153 = arith.mulf %60, %152 : vector<16x64xf32>
      %154 = arith.mulf %153, %96 : vector<16x64xf32>
      %cst_54 = arith.constant -2.500000e+00 : f32
      %155 = vector.broadcast %cst_54 : f32 to vector<16x64xf32>
      %156 = arith.mulf %64, %155 : vector<16x64xf32>
      %157 = arith.mulf %156, %100 : vector<16x64xf32>
      %158 = arith.addf %154, %157 : vector<16x64xf32>
      %cst_55 = arith.constant 2.500000e+00 : f32
      %159 = vector.broadcast %cst_55 : f32 to vector<16x64xf32>
      %160 = arith.mulf %62, %159 : vector<16x64xf32>
      %161 = arith.mulf %160, %100 : vector<16x64xf32>
      %cst_56 = arith.constant -2.500000e+00 : f32
      %162 = vector.broadcast %cst_56 : f32 to vector<16x64xf32>
      %163 = arith.mulf %66, %162 : vector<16x64xf32>
      %164 = arith.mulf %163, %104 : vector<16x64xf32>
      %165 = arith.addf %161, %164 : vector<16x64xf32>
      %cst_57 = arith.constant 2.500000e+00 : f32
      %166 = vector.broadcast %cst_57 : f32 to vector<16x64xf32>
      %167 = arith.mulf %64, %166 : vector<16x64xf32>
      %168 = arith.mulf %167, %104 : vector<16x64xf32>
      %cst_58 = arith.constant -2.500000e+00 : f32
      %169 = vector.broadcast %cst_58 : f32 to vector<16x64xf32>
      %170 = arith.mulf %68, %169 : vector<16x64xf32>
      %171 = arith.mulf %170, %108 : vector<16x64xf32>
      %172 = arith.addf %168, %171 : vector<16x64xf32>
      %cst_59 = arith.constant 2.500000e+00 : f32
      %173 = vector.broadcast %cst_59 : f32 to vector<16x64xf32>
      %174 = arith.mulf %66, %173 : vector<16x64xf32>
      %175 = arith.mulf %174, %108 : vector<16x64xf32>
      %cst_60 = arith.constant -2.500000e+00 : f32
      %176 = vector.broadcast %cst_60 : f32 to vector<16x64xf32>
      %177 = arith.mulf %70, %176 : vector<16x64xf32>
      %178 = arith.mulf %177, %112 : vector<16x64xf32>
      %179 = arith.addf %175, %178 : vector<16x64xf32>
      %cst_61 = arith.constant 2.500000e+00 : f32
      %180 = vector.broadcast %cst_61 : f32 to vector<16x64xf32>
      %181 = arith.mulf %68, %180 : vector<16x64xf32>
      %182 = arith.mulf %181, %112 : vector<16x64xf32>
      %cst_62 = arith.constant -2.500000e+00 : f32
      %183 = vector.broadcast %cst_62 : f32 to vector<16x64xf32>
      %184 = arith.mulf %72, %183 : vector<16x64xf32>
      %185 = arith.mulf %184, %116 : vector<16x64xf32>
      %186 = arith.addf %182, %185 : vector<16x64xf32>
      %cst_63 = arith.constant 1.250000e+00 : f32
      %187 = vector.broadcast %cst_63 : f32 to vector<16x64xf32>
      %188 = arith.mulf %50, %187 : vector<16x64xf32>
      %189 = arith.mulf %188, %123 : vector<16x64xf32>
      %cst_64 = arith.constant -1.250000e+00 : f32
      %190 = vector.broadcast %cst_64 : f32 to vector<16x64xf32>
      %191 = arith.mulf %56, %190 : vector<16x64xf32>
      %192 = arith.mulf %191, %130 : vector<16x64xf32>
      %193 = arith.addf %189, %192 : vector<16x64xf32>
      %cst_65 = arith.constant 1.250000e+00 : f32
      %194 = vector.broadcast %cst_65 : f32 to vector<16x64xf32>
      %195 = arith.mulf %52, %194 : vector<16x64xf32>
      %196 = arith.mulf %195, %130 : vector<16x64xf32>
      %cst_66 = arith.constant -1.250000e+00 : f32
      %197 = vector.broadcast %cst_66 : f32 to vector<16x64xf32>
      %198 = arith.mulf %58, %197 : vector<16x64xf32>
      %199 = arith.mulf %198, %137 : vector<16x64xf32>
      %200 = arith.addf %196, %199 : vector<16x64xf32>
      %cst_67 = arith.constant 1.250000e+00 : f32
      %201 = vector.broadcast %cst_67 : f32 to vector<16x64xf32>
      %202 = arith.mulf %54, %201 : vector<16x64xf32>
      %203 = arith.mulf %202, %137 : vector<16x64xf32>
      %cst_68 = arith.constant -1.250000e+00 : f32
      %204 = vector.broadcast %cst_68 : f32 to vector<16x64xf32>
      %205 = arith.mulf %60, %204 : vector<16x64xf32>
      %206 = arith.mulf %205, %144 : vector<16x64xf32>
      %207 = arith.addf %203, %206 : vector<16x64xf32>
      %cst_69 = arith.constant 1.250000e+00 : f32
      %208 = vector.broadcast %cst_69 : f32 to vector<16x64xf32>
      %209 = arith.mulf %56, %208 : vector<16x64xf32>
      %210 = arith.mulf %209, %144 : vector<16x64xf32>
      %cst_70 = arith.constant -1.250000e+00 : f32
      %211 = vector.broadcast %cst_70 : f32 to vector<16x64xf32>
      %212 = arith.mulf %62, %211 : vector<16x64xf32>
      %213 = arith.mulf %212, %151 : vector<16x64xf32>
      %214 = arith.addf %210, %213 : vector<16x64xf32>
      %cst_71 = arith.constant 1.250000e+00 : f32
      %215 = vector.broadcast %cst_71 : f32 to vector<16x64xf32>
      %216 = arith.mulf %58, %215 : vector<16x64xf32>
      %217 = arith.mulf %216, %151 : vector<16x64xf32>
      %cst_72 = arith.constant -1.250000e+00 : f32
      %218 = vector.broadcast %cst_72 : f32 to vector<16x64xf32>
      %219 = arith.mulf %64, %218 : vector<16x64xf32>
      %220 = arith.mulf %219, %158 : vector<16x64xf32>
      %221 = arith.addf %217, %220 : vector<16x64xf32>
      %cst_73 = arith.constant 1.250000e+00 : f32
      %222 = vector.broadcast %cst_73 : f32 to vector<16x64xf32>
      %223 = arith.mulf %60, %222 : vector<16x64xf32>
      %224 = arith.mulf %223, %158 : vector<16x64xf32>
      %cst_74 = arith.constant -1.250000e+00 : f32
      %225 = vector.broadcast %cst_74 : f32 to vector<16x64xf32>
      %226 = arith.mulf %66, %225 : vector<16x64xf32>
      %227 = arith.mulf %226, %165 : vector<16x64xf32>
      %228 = arith.addf %224, %227 : vector<16x64xf32>
      %cst_75 = arith.constant 1.250000e+00 : f32
      %229 = vector.broadcast %cst_75 : f32 to vector<16x64xf32>
      %230 = arith.mulf %62, %229 : vector<16x64xf32>
      %231 = arith.mulf %230, %165 : vector<16x64xf32>
      %cst_76 = arith.constant -1.250000e+00 : f32
      %232 = vector.broadcast %cst_76 : f32 to vector<16x64xf32>
      %233 = arith.mulf %68, %232 : vector<16x64xf32>
      %234 = arith.mulf %233, %172 : vector<16x64xf32>
      %235 = arith.addf %231, %234 : vector<16x64xf32>
      %cst_77 = arith.constant 1.250000e+00 : f32
      %236 = vector.broadcast %cst_77 : f32 to vector<16x64xf32>
      %237 = arith.mulf %64, %236 : vector<16x64xf32>
      %238 = arith.mulf %237, %172 : vector<16x64xf32>
      %cst_78 = arith.constant -1.250000e+00 : f32
      %239 = vector.broadcast %cst_78 : f32 to vector<16x64xf32>
      %240 = arith.mulf %70, %239 : vector<16x64xf32>
      %241 = arith.mulf %240, %179 : vector<16x64xf32>
      %242 = arith.addf %238, %241 : vector<16x64xf32>
      %cst_79 = arith.constant 1.250000e+00 : f32
      %243 = vector.broadcast %cst_79 : f32 to vector<16x64xf32>
      %244 = arith.mulf %66, %243 : vector<16x64xf32>
      %245 = arith.mulf %244, %179 : vector<16x64xf32>
      %cst_80 = arith.constant -1.250000e+00 : f32
      %246 = vector.broadcast %cst_80 : f32 to vector<16x64xf32>
      %247 = arith.mulf %72, %246 : vector<16x64xf32>
      %248 = arith.mulf %247, %186 : vector<16x64xf32>
      %249 = arith.addf %245, %248 : vector<16x64xf32>
      %cst_81 = arith.constant 0.833333313 : f32
      %250 = vector.broadcast %cst_81 : f32 to vector<16x64xf32>
      %251 = arith.mulf %50, %250 : vector<16x64xf32>
      %252 = arith.mulf %251, %193 : vector<16x64xf32>
      %cst_82 = arith.constant -0.833333313 : f32
      %253 = vector.broadcast %cst_82 : f32 to vector<16x64xf32>
      %254 = arith.mulf %58, %253 : vector<16x64xf32>
      %255 = arith.mulf %254, %200 : vector<16x64xf32>
      %256 = arith.addf %252, %255 : vector<16x64xf32>
      %cst_83 = arith.constant 0.833333313 : f32
      %257 = vector.broadcast %cst_83 : f32 to vector<16x64xf32>
      %258 = arith.mulf %52, %257 : vector<16x64xf32>
      %259 = arith.mulf %258, %200 : vector<16x64xf32>
      %cst_84 = arith.constant -0.833333313 : f32
      %260 = vector.broadcast %cst_84 : f32 to vector<16x64xf32>
      %261 = arith.mulf %60, %260 : vector<16x64xf32>
      %262 = arith.mulf %261, %207 : vector<16x64xf32>
      %263 = arith.addf %259, %262 : vector<16x64xf32>
      %cst_85 = arith.constant 0.833333313 : f32
      %264 = vector.broadcast %cst_85 : f32 to vector<16x64xf32>
      %265 = arith.mulf %54, %264 : vector<16x64xf32>
      %266 = arith.mulf %265, %207 : vector<16x64xf32>
      %cst_86 = arith.constant -0.833333313 : f32
      %267 = vector.broadcast %cst_86 : f32 to vector<16x64xf32>
      %268 = arith.mulf %62, %267 : vector<16x64xf32>
      %269 = arith.mulf %268, %214 : vector<16x64xf32>
      %270 = arith.addf %266, %269 : vector<16x64xf32>
      %cst_87 = arith.constant 0.833333313 : f32
      %271 = vector.broadcast %cst_87 : f32 to vector<16x64xf32>
      %272 = arith.mulf %56, %271 : vector<16x64xf32>
      %273 = arith.mulf %272, %214 : vector<16x64xf32>
      %cst_88 = arith.constant -0.833333313 : f32
      %274 = vector.broadcast %cst_88 : f32 to vector<16x64xf32>
      %275 = arith.mulf %64, %274 : vector<16x64xf32>
      %276 = arith.mulf %275, %221 : vector<16x64xf32>
      %277 = arith.addf %273, %276 : vector<16x64xf32>
      %cst_89 = arith.constant 0.833333313 : f32
      %278 = vector.broadcast %cst_89 : f32 to vector<16x64xf32>
      %279 = arith.mulf %58, %278 : vector<16x64xf32>
      %280 = arith.mulf %279, %221 : vector<16x64xf32>
      %cst_90 = arith.constant -0.833333313 : f32
      %281 = vector.broadcast %cst_90 : f32 to vector<16x64xf32>
      %282 = arith.mulf %66, %281 : vector<16x64xf32>
      %283 = arith.mulf %282, %228 : vector<16x64xf32>
      %284 = arith.addf %280, %283 : vector<16x64xf32>
      %cst_91 = arith.constant 0.833333313 : f32
      %285 = vector.broadcast %cst_91 : f32 to vector<16x64xf32>
      %286 = arith.mulf %60, %285 : vector<16x64xf32>
      %287 = arith.mulf %286, %228 : vector<16x64xf32>
      %cst_92 = arith.constant -0.833333313 : f32
      %288 = vector.broadcast %cst_92 : f32 to vector<16x64xf32>
      %289 = arith.mulf %68, %288 : vector<16x64xf32>
      %290 = arith.mulf %289, %235 : vector<16x64xf32>
      %291 = arith.addf %287, %290 : vector<16x64xf32>
      %cst_93 = arith.constant 0.833333313 : f32
      %292 = vector.broadcast %cst_93 : f32 to vector<16x64xf32>
      %293 = arith.mulf %62, %292 : vector<16x64xf32>
      %294 = arith.mulf %293, %235 : vector<16x64xf32>
      %cst_94 = arith.constant -0.833333313 : f32
      %295 = vector.broadcast %cst_94 : f32 to vector<16x64xf32>
      %296 = arith.mulf %70, %295 : vector<16x64xf32>
      %297 = arith.mulf %296, %242 : vector<16x64xf32>
      %298 = arith.addf %294, %297 : vector<16x64xf32>
      %cst_95 = arith.constant 0.833333313 : f32
      %299 = vector.broadcast %cst_95 : f32 to vector<16x64xf32>
      %300 = arith.mulf %64, %299 : vector<16x64xf32>
      %301 = arith.mulf %300, %242 : vector<16x64xf32>
      %cst_96 = arith.constant -0.833333313 : f32
      %302 = vector.broadcast %cst_96 : f32 to vector<16x64xf32>
      %303 = arith.mulf %72, %302 : vector<16x64xf32>
      %304 = arith.mulf %303, %249 : vector<16x64xf32>
      %305 = arith.addf %301, %304 : vector<16x64xf32>
      %306 = arith.truncf %256 : vector<16x64xf32> to vector<16x64xbf16>
      %307 = arith.truncf %263 : vector<16x64xf32> to vector<16x64xbf16>
      %308 = arith.truncf %270 : vector<16x64xf32> to vector<16x64xbf16>
      %309 = arith.truncf %277 : vector<16x64xf32> to vector<16x64xbf16>
      %310 = arith.truncf %284 : vector<16x64xf32> to vector<16x64xbf16>
      %311 = arith.truncf %291 : vector<16x64xf32> to vector<16x64xbf16>
      %312 = arith.truncf %298 : vector<16x64xf32> to vector<16x64xbf16>
      %313 = arith.truncf %305 : vector<16x64xf32> to vector<16x64xbf16>
      %314 = tpu.concatenate %24, %306, %307, %308, %309, %310, %311, %312, %313 in 1 : vector<16x64xbf16>, vector<16x64xbf16>, vector<16x64xbf16>, vector<16x64xbf16>, vector<16x64xbf16>, vector<16x64xbf16>, vector<16x64xbf16>, vector<16x64xbf16>, vector<16x64xbf16> -> vector<16x576xbf16>
      %c0_97 = arith.constant 0 : index
      %c0_98 = arith.constant 0 : index
      %c0_99 = arith.constant 0 : index
      %315 = vector.load %arg7[%c0_97, %c0_98, %c0_99] : memref<1x576x32xbf16, #tpu.memory_space<vmem>>, vector<1x576x32xbf16>
      %316 = vector.shape_cast %315 : vector<1x576x32xbf16> to vector<576x32xbf16>
      %cst_100 = arith.constant dense<0.000000e+00> : vector<16x32xf32>
      %317 = tpu.matmul %314, %316, %cst_100 {dimension_numbers = #tpu.dot_dimension_numbers<[1], [0], [0], [1], [0, 0, 1, 1], [], []>} : vector<16x576xbf16>, vector<576x32xbf16>, vector<16x32xf32> -> vector<16x32xf32>
      %c0_101 = arith.constant 0 : index
      %c0_102 = arith.constant 0 : index
      %318 = vector.load %arg10[%c0_101, %c0_102] : memref<16x32xf32, #tpu.memory_space<vmem>>, vector<16x32xf32>
      %c0_103 = arith.constant 0 : index
      %c0_104 = arith.constant 0 : index
      %c0_105 = arith.constant 0 : index
      %319 = vector.load %arg4[%c0_103, %c0_104, %c0_105] : memref<1x16x1xf32, #tpu.memory_space<vmem>>, vector<1x16x1xf32>
      %320 = vector.shape_cast %319 : vector<1x16x1xf32> to vector<16x1xf32>
      %321 = vector.broadcast %320 : vector<16x1xf32> to vector<16x32xf32>
      %322 = arith.mulf %321, %317 : vector<16x32xf32>
      %323 = arith.addf %318, %322 : vector<16x32xf32>
      %c0_106 = arith.constant 0 : index
      %c0_107 = arith.constant 0 : index
      %324 = vector.load %arg10[%c0_106, %c0_107] : memref<16x32xf32, #tpu.memory_space<vmem>>, vector<16x32xf32>
      tpu.vector_store %arg10[%c0_106, %c0_107], %323 {strides = array<i32>} : memref<16x32xf32, #tpu.memory_space<vmem>>, vector<16x32xf32>,
    } else {
    }
    %c3_i32 = arith.constant 3 : i32
    %8 = arith.cmpi eq, %arg1, %c3_i32 : i32
    %9 = arith.extui %8 : i1 to i32
    %c0_i32_2 = arith.constant 0 : i32
    %10 = arith.cmpi ne, %9, %c0_i32_2 : i32
    scf.if %10 {
      %c0 = arith.constant 0 : index
      %c0_3 = arith.constant 0 : index
      %11 = vector.load %arg10[%c0, %c0_3] : memref<16x32xf32, #tpu.memory_space<vmem>>, vector<16x32xf32>
      %c0_4 = arith.constant 0 : index
      %c0_5 = arith.constant 0 : index
      %12 = vector.load %arg8[%c0_4, %c0_5] : memref<16x32xf32, #tpu.memory_space<vmem>>, vector<16x32xf32>
      tpu.vector_store %arg8[%c0_4, %c0_5], %11 {strides = array<i32>} : memref<16x32xf32, #tpu.memory_space<vmem>>, vector<16x32xf32>,
    } else {
    }
    return
  }
  func.func @transform_0(%arg0: i32, %arg1: i32, %arg2: memref<4xi32, #tpu.memory_space<smem>>, %arg3: memref<1xi32, #tpu.memory_space<smem>>) -> (i32, i32, i32) {
    %c4_i32 = arith.constant 4 : i32
    %0 = arith.muli %arg0, %c4_i32 : i32
    %1 = arith.addi %0, %arg1 : i32
    %2 = arith.index_cast %1 : i32 to index
    %3 = memref.load %arg2[%2] : memref<4xi32, #tpu.memory_space<smem>>
    %c0_i32 = arith.constant 0 : i32
    %c0_i32_0 = arith.constant 0 : i32
    return %3, %arg0, %c0_i32 : i32, i32, i32
  }
  func.func @transform_1(%arg0: i32, %arg1: i32, %arg2: memref<4xi32, #tpu.memory_space<smem>>, %arg3: memref<1xi32, #tpu.memory_space<smem>>) -> (i32, i32) {
    %c0_i32 = arith.constant 0 : i32
    %c0_i32_0 = arith.constant 0 : i32
    return %arg0, %c0_i32 : i32, i32
  }
  func.func @transform_2(%arg0: i32, %arg1: i32, %arg2: memref<4xi32, #tpu.memory_space<smem>>, %arg3: memref<1xi32, #tpu.memory_space<smem>>) -> (i32, i32, i32) {
    %c4_i32 = arith.constant 4 : i32
    %0 = arith.muli %arg0, %c4_i32 : i32
    %1 = arith.addi %0, %arg1 : i32
    %2 = arith.index_cast %1 : i32 to index
    %3 = memref.load %arg2[%2] : memref<4xi32, #tpu.memory_space<smem>>
    %c0_i32 = arith.constant 0 : i32
    %c0_i32_0 = arith.constant 0 : i32
    %c0_i32_1 = arith.constant 0 : i32
    return %3, %c0_i32, %c0_i32_0 : i32, i32, i32
  }
  func.func @transform_3(%arg0: i32, %arg1: i32, %arg2: memref<4xi32, #tpu.memory_space<smem>>, %arg3: memref<1xi32, #tpu.memory_space<smem>>) -> (i32, i32, i32) {
    %c4_i32 = arith.constant 4 : i32
    %0 = arith.muli %arg0, %c4_i32 : i32
    %1 = arith.addi %0, %arg1 : i32
    %2 = arith.index_cast %1 : i32 to index
    %3 = memref.load %arg2[%2] : memref<4xi32, #tpu.memory_space<smem>>
    %c0_i32 = arith.constant 0 : i32
    %c0_i32_0 = arith.constant 0 : i32
    %c0_i32_1 = arith.constant 0 : i32
    return %3, %c0_i32, %c0_i32_0 : i32, i32, i32
  }
  func.func @transform_4(%arg0: i32, %arg1: i32, %arg2: memref<4xi32, #tpu.memory_space<smem>>, %arg3: memref<1xi32, #tpu.memory_space<smem>>) -> (i32, i32) {
    %c0_i32 = arith.constant 0 : i32
    %c0_i32_0 = arith.constant 0 : i32
    return %arg0, %c0_i32 : i32, i32
  }
}

</mosaic_0001>

<llo_original>
// kernel: tpu_custom_call.1
$region0: #{tpu_custom_call.1}
  #allocation0 [shape = 'u32[]', space=smem, size = 0x4, offset = 0x4, fixed_abs, tag = 'smem constant byte address 0x4 - core index']
  #allocation1 [shape = 'u32[144,128]{1,0:T(1,128)}', space=vmem, size = 0x12000, scoped, tag = 'internal scratch']
  #allocation2 [shape = 'bf16[16,288]{1,0:T(8,128)(2,1)}', space=vmem, size = 0x3000, scoped, tag = 'scratch operand']
  #allocation3 [shape = 'f32[16,32]{1,0:T(8,128)}', space=vmem, size = 0x2000, scoped, tag = 'scratch operand']
  #allocation4 [shape = 's32[1]{0}', space=sflag, size = 0x4, scoped, tag = 'scoped memory for tpu_custom_call.1']
  #allocation5 [shape = 'u8[512]{0}', space=smem, size = 0x200, scoped, tag = 'prefetched SMEM operand 0']
  #allocation6 [shape = 's32[1]{0:T(128)S(6)}', space=smem, size = 0x200, scoped, tag = 'prefetched SMEM operand 1']
  %s0 = inlined_call_operand.vmem [shape: s32[4], index: 0, kind: input, shape index: {}]
  %s1 = inlined_call_operand.<no memory space> [shape: s32[1], index: 1, kind: input, shape index: {}]
  %s2 = inlined_call_operand.vmem [shape: f32[4,16,1], index: 2, kind: input, shape index: {}]
  %s3 = inlined_call_operand.vmem [shape: f32[16,32], index: 3, kind: input, shape index: {}]
  %s4 = inlined_call_operand.vmem [shape: bf16[4,288,128], index: 4, kind: input, shape index: {}]
  %s5 = inlined_call_operand.vmem [shape: bf16[4,576,32], index: 5, kind: input, shape index: {}]
  %s6 = inlined_call_operand.hbm [shape: f32[16,32], index: 6, kind: output, shape index: {}]
  %s7 = sld [smem:[#allocation0]]
  $region61: #{tpu_custom_call.1} parent=0
    _
  %s9 = ssub.s32 1, %s7
  %s10 = scalar_select 0, %s9, %s7
  %s11 = sshll.u32 %s0, 4
  %s12 = int_to_ptr.vmem [resolvable:$true] %s11
  %14 = dma.vmem_to_smem %s12, 16, [#allocation5], [#allocation4]
  %15 = sst [smem:[#allocation6]] %s1
  %16 = dma.done [#allocation4], 16
  %17 = sfence
  $region1: #{tpu_custom_call.1} parent=0
    #allocation7 [shape = 'u8[8192]{0}', space=vmem, size = 0x2000, scoped, tag = 'output window, operand 0, single buffered']
    #allocation8 [shape = 's32[2]{0}', space=sflag, size = 0x8, scoped, tag = 'scoped memory for tpu_custom_call.1']
    %18 = vsyncpa [#allocation8], 0
    loop: start=0, step=1, limit=6
    $region2: #{tpu_custom_call.1} parent=1 // loop_pre_header
      _
    $region3: #{tpu_custom_call.1} parent=1 // loop_header
      %s20 = sphi 0, %s24
      %p21 = scmp.ge.s32.totalorder %s20, 6
      %s27 = sphi 0, %s39
      %s28 = sphi 0, %s35
      %s29 = sphi 0, %s27
      %s30 = sphi 0, %s28
      %s31 = sphi 0, %s29
      %s32 = sphi 0, %s30
      %s50 = sphi 0, %s52
      %s53 = sphi 0, %s50
      %s54 = sphi 0, %s53
      %s70 = sphi 0, %s54
      %s76 = sphi 0, %s78
      %s79 = sphi 0, %s76
      %s80 = sphi 0, %s79
      %s96 = sphi 0, %s80
      %s108 = sphi 0, %s110
      %s111 = sphi 0, %s108
      %s112 = sphi 0, %s111
      %s128 = sphi 0, %s112
      %s140 = sphi 0, %s142
      %s143 = sphi 0, %s140
      %s144 = sphi 0, %s143
      %s160 = sphi 0, %s144
      %s166 = sphi 0, %s168
      %s169 = sphi 0, %s166
      %s170 = sphi 0, %s169
      %s186 = sphi 0, %s170
    $region4: #{tpu_custom_call.1} parent=1 // loop_header_branch
      %23 = sbr.rel (%p21) target = $region8
    $region5: #{tpu_custom_call.1} parent=1 // loop_body
      %s25 = ssub.s32 %s20, 1
      %s26 = ssub.s32 %s20, 2
      %s33 = sadd.s32 1, %s28
      %p34 = scmp.ge.s32.totalorder %s33, 4
      %s35 = scalar_select %p34, 0, %s33
      %s36 = sadd.s32 1, %s27
      %s37 = scalar_select %p34, %s36, %s27
      %p38 = scmp.ge.s32.totalorder %s37, 1
      %s39 = scalar_select %p38, 0, %s37
      %s40 = smul.u32 %s27, 4
      %s41 = sadd.s32 %s40, %s28
      %s42 = sld [smem:[#allocation5 + %s41]]
      %s43 = smul.u32 %s39, 4
      %s44 = sadd.s32 %s43, %s35
      %s45 = sld [smem:[#allocation5 + %s44]]
      %s46 = ssub.s32 %s42, %s45
      %s47 = ssub.s32 %s27, %s39
      %s48 = sor.u32 %s46, %s47
      %p49 = scmp.eq.s32.totalorder %s48, 0
      %s51 = sadd.s32 %s50, 1
      %s52 = scalar_select %p49, %s50, %s51
      %p55 = pneg %p49
      %p56 = scmp.eq.s32.totalorder %s20, 3
      %p57 = por %p55, %p56
      %p58 = scmp.ne.s32.totalorder %s50, %s53
      %p59 = scmp.eq.s32.totalorder %s20, 0
      %p60 = por %p58, %p59
      %p61 = scmp.ne.s32.totalorder %s50, %s53
      %p62 = scmp.eq.s32.totalorder %s25, 3
      %p63 = por %p61, %p62
      %p64 = scmp.ne.s32.totalorder %s53, %s54
      %p65 = scmp.eq.s32.totalorder %s25, 0
      %p66 = por %p64, %p65
      %p67 = scmp.ne.s32.totalorder %s53, %s54
      %p68 = scmp.eq.s32.totalorder %s26, 3
      %p69 = por %p67, %p68
      %p71 = scmp.ne.s32.totalorder %s54, %s70
      %p72 = scmp.eq.s32.totalorder %s26, 0
      %p73 = por %p71, %p72
      %s74 = ssub.s32 %s27, %s39
      %p75 = scmp.eq.s32.totalorder %s74, 0
      %s77 = sadd.s32 %s76, 1
      %s78 = scalar_select %p75, %s76, %s77
      %p81 = pneg %p75
      %p82 = scmp.eq.s32.totalorder %s20, 3
      %p83 = por %p81, %p82
      %p84 = scmp.ne.s32.totalorder %s76, %s79
      %p85 = scmp.eq.s32.totalorder %s20, 0
      %p86 = por %p84, %p85
      %p87 = scmp.ne.s32.totalorder %s76, %s79
      %p88 = scmp.eq.s32.totalorder %s25, 3
      %p89 = por %p87, %p88
      %p90 = scmp.ne.s32.totalorder %s79, %s80
      %p91 = scmp.eq.s32.totalorder %s25, 0
      %p92 = por %p90, %p91
      %p93 = scmp.ne.s32.totalorder %s79, %s80
      %p94 = scmp.eq.s32.totalorder %s26, 3
      %p95 = por %p93, %p94
      %p97 = scmp.ne.s32.totalorder %s80, %s96
      %p98 = scmp.eq.s32.totalorder %s26, 0
      %p99 = por %p97, %p98
      %s100 = smul.u32 %s27, 4
      %s101 = sadd.s32 %s100, %s28
      %s102 = sld [smem:[#allocation5 + %s101]]
      %s103 = smul.u32 %s39, 4
      %s104 = sadd.s32 %s103, %s35
      %s105 = sld [smem:[#allocation5 + %s104]]
      %s106 = ssub.s32 %s102, %s105
      %p107 = scmp.eq.s32.totalorder %s106, 0
      %s109 = sadd.s32 %s108, 1
      %s110 = scalar_select %p107, %s108, %s109
      %p113 = pneg %p107
      %p114 = scmp.eq.s32.totalorder %s20, 3
      %p115 = por %p113, %p114
      %p116 = scmp.ne.s32.totalorder %s108, %s111
      %p117 = scmp.eq.s32.totalorder %s20, 0
      %p118 = por %p116, %p117
      %p119 = scmp.ne.s32.totalorder %s108, %s111
      %p120 = scmp.eq.s32.totalorder %s25, 3
      %p121 = por %p119, %p120
      %p122 = scmp.ne.s32.totalorder %s111, %s112
      %p123 = scmp.eq.s32.totalorder %s25, 0
      %p124 = por %p122, %p123
      %p125 = scmp.ne.s32.totalorder %s111, %s112
      %p126 = scmp.eq.s32.totalorder %s26, 3
      %p127 = por %p125, %p126
      %p129 = scmp.ne.s32.totalorder %s112, %s128
      %p130 = scmp.eq.s32.totalorder %s26, 0
      %p131 = por %p129, %p130
      %s132 = smul.u32 %s27, 4
      %s133 = sadd.s32 %s132, %s28
      %s134 = sld [smem:[#allocation5 + %s133]]
      %s135 = smul.u32 %s39, 4
      %s136 = sadd.s32 %s135, %s35
      %s137 = sld [smem:[#allocation5 + %s136]]
      %s138 = ssub.s32 %s134, %s137
      %p139 = scmp.eq.s32.totalorder %s138, 0
      %s141 = sadd.s32 %s140, 1
      %s142 = scalar_select %p139, %s140, %s141
      %p145 = pneg %p139
      %p146 = scmp.eq.s32.totalorder %s20, 3
      %p147 = por %p145, %p146
      %p148 = scmp.ne.s32.totalorder %s140, %s143
      %p149 = scmp.eq.s32.totalorder %s20, 0
      %p150 = por %p148, %p149
      %p151 = scmp.ne.s32.totalorder %s140, %s143
      %p152 = scmp.eq.s32.totalorder %s25, 3
      %p153 = por %p151, %p152
      %p154 = scmp.ne.s32.totalorder %s143, %s144
      %p155 = scmp.eq.s32.totalorder %s25, 0
      %p156 = por %p154, %p155
      %p157 = scmp.ne.s32.totalorder %s143, %s144
      %p158 = scmp.eq.s32.totalorder %s26, 3
      %p159 = por %p157, %p158
      %p161 = scmp.ne.s32.totalorder %s144, %s160
      %p162 = scmp.eq.s32.totalorder %s26, 0
      %p163 = por %p161, %p162
      %s164 = ssub.s32 %s27, %s39
      %p165 = scmp.eq.s32.totalorder %s164, 0
      %s167 = sadd.s32 %s166, 1
      %s168 = scalar_select %p165, %s166, %s167
      %p171 = pneg %p165
      %p172 = scmp.eq.s32.totalorder %s20, 3
      %p173 = por %p171, %p172
      %p174 = scmp.ne.s32.totalorder %s166, %s169
      %p175 = scmp.eq.s32.totalorder %s20, 0
      %p176 = por %p174, %p175
      %p177 = scmp.ne.s32.totalorder %s166, %s169
      %p178 = scmp.eq.s32.totalorder %s25, 3
      %p179 = por %p177, %p178
      %p180 = scmp.ne.s32.totalorder %s169, %s170
      %p181 = scmp.eq.s32.totalorder %s25, 0
      %p182 = por %p180, %p181
      %p183 = scmp.ne.s32.totalorder %s169, %s170
      %p184 = scmp.eq.s32.totalorder %s26, 3
      %p185 = por %p183, %p184
      %p187 = scmp.ne.s32.totalorder %s170, %s186
      %p188 = scmp.eq.s32.totalorder %s26, 0
      %p189 = por %p187, %p188
      %p190 = scmp.le.s32.totalorder 1, %s20
      %p191 = scmp.lt.s32.totalorder %s20, 5
      %p192 = pnand %p190, %p191
      %p193 = pneg %p192
      // Predicated region
      $region9: #{tpu_custom_call.1} parent=5 // pred_check
        _
      $region10: #{tpu_custom_call.1} parent=5 // pred_check_branch
        %195 = sbr.rel (%p192) target = $region12
      $region11: #{tpu_custom_call.1} parent=5 // pred_region
        %s196 = ssub.s32 %s20, 1
        // Predicated region
        $region13: #{tpu_custom_call.1} parent=11 // pred_check
          %p197 = pneg %p92
        $region14: #{tpu_custom_call.1} parent=11 // pred_check_branch
          %199 = sbr.rel (%p197) target = $region16
        $region15: #{tpu_custom_call.1} parent=11 // pred_region
          %s200 = smul.u32 2, %s29
          %p201 = scmp.lt.s32.totalorder %s200, 1
          %s202 = scalar_select %p201, %s200, 1
          %s203 = smul.addr %s202, 8
          %s204 = scalar_lea.vmem %s3, %s203
          %s205 = smul.u32 2, %s29
        $region16: #{tpu_custom_call.1} parent=11 // pred_fallthru
          _
      $region12: #{tpu_custom_call.1} parent=5 // pred_fallthru
        _
      %p206 = scmp.lt.s32.totalorder %s20, 4
      // Predicated region
      $region17: #{tpu_custom_call.1} parent=5 // pred_check
        %p207 = pneg %p206
      $region18: #{tpu_custom_call.1} parent=5 // pred_check_branch
        %209 = sbr.rel (%p207) target = $region20
      $region19: #{tpu_custom_call.1} parent=5 // pred_region
        // Predicated region
        $region21: #{tpu_custom_call.1} parent=19 // pred_check
          %p210 = pneg %p60
        $region22: #{tpu_custom_call.1} parent=19 // pred_check_branch
          %212 = sbr.rel (%p210) target = $region24
        $region23: #{tpu_custom_call.1} parent=19 // pred_region
          %s213 = smul.u32 %s27, 4
          %s214 = sadd.s32 %s213, %s28
          %s215 = sld [smem:[#allocation5 + %s214]]
          %s216 = smul.u32 2, %s27
          %p217 = scmp.lt.s32.totalorder %s215, 3
          %s218 = scalar_select %p217, %s215, 3
          %p219 = scmp.lt.s32.totalorder %s216, 1
          %s220 = scalar_select %p219, %s216, 1
          %s221 = smul.addr %s218, 2
          %s222 = sadd.s32 %s220, %s221
          %s223 = smul.addr %s222, 8
          %s224 = scalar_lea.vmem %s2, %s223
          %s225 = smul.u32 %s27, 4
          %s226 = sadd.s32 %s225, %s28
          %s227 = sld [smem:[#allocation5 + %s226]]
          %s228 = smul.u32 2, %s27
        $region24: #{tpu_custom_call.1} parent=19 // pred_fallthru
          _
        // Predicated region
        $region25: #{tpu_custom_call.1} parent=19 // pred_check
          %p229 = pneg %p118
        $region26: #{tpu_custom_call.1} parent=19 // pred_check_branch
          %231 = sbr.rel (%p229) target = $region28
        $region27: #{tpu_custom_call.1} parent=19 // pred_region
          %s232 = smul.u32 %s27, 4
          %s233 = sadd.s32 %s232, %s28
          %s234 = sld [smem:[#allocation5 + %s233]]
          %p235 = scmp.lt.s32.totalorder %s234, 3
          %s236 = scalar_select %p235, %s234, 3
          %s237 = smul.addr %s236, 36
          %s238 = smul.addr %s237, 4
          %s239 = scalar_lea.vmem %s4, %s238
          %s240 = smul.u32 %s27, 4
          %s241 = sadd.s32 %s240, %s28
          %s242 = sld [smem:[#allocation5 + %s241]]
        $region28: #{tpu_custom_call.1} parent=19 // pred_fallthru
          _
        // Predicated region
        $region29: #{tpu_custom_call.1} parent=19 // pred_check
          %p243 = pneg %p150
        $region30: #{tpu_custom_call.1} parent=19 // pred_check_branch
          %245 = sbr.rel (%p243) target = $region32
        $region31: #{tpu_custom_call.1} parent=19 // pred_region
          %s246 = smul.u32 %s27, 4
          %s247 = sadd.s32 %s246, %s28
          %s248 = sld [smem:[#allocation5 + %s247]]
          %p249 = scmp.lt.s32.totalorder %s248, 3
          %s250 = scalar_select %p249, %s248, 3
          %s251 = smul.addr %s250, 72
          %s252 = smul.addr %s251, 4
          %s253 = scalar_lea.vmem %s5, %s252
          %s254 = smul.u32 %s27, 4
          %s255 = sadd.s32 %s254, %s28
          %s256 = sld [smem:[#allocation5 + %s255]]
        $region32: #{tpu_custom_call.1} parent=19 // pred_fallthru
          _
      $region20: #{tpu_custom_call.1} parent=5 // pred_fallthru
        _
      %p257 = scmp.le.s32.totalorder 1, %s20
      %p258 = scmp.lt.s32.totalorder %s20, 5
      %p259 = pnand %p257, %p258
      %p260 = pneg %p259
      // Predicated region
      $region33: #{tpu_custom_call.1} parent=5 // pred_check
        _
      $region34: #{tpu_custom_call.1} parent=5 // pred_check_branch
        %262 = sbr.rel (%p259) target = $region36
      $region35: #{tpu_custom_call.1} parent=5 // pred_region
        %s263 = ssub.s32 %s20, 1
        %s264 = smul.u32 %s29, 4
        %s265 = sadd.s32 %s264, %s30
        %s266 = sld [smem:[#allocation5 + %s265]]
        %s267 = smul.u32 2, %s29
        %p268 = scmp.lt.s32.totalorder %s266, 3
        %s269 = scalar_select %p268, %s266, 3
        %p270 = scmp.lt.s32.totalorder %s267, 1
        %s271 = scalar_select %p270, %s267, 1
        %s272 = smul.addr %s269, 2
        %s273 = sadd.s32 %s271, %s272
        %s274 = smul.addr %s273, 8
        %s275 = scalar_lea.vmem %s2, %s274
        %p276 = pneg %p66
        %p277 = pneg %p63
        %s278 = smul.u32 2, %s29
        %p279 = scmp.lt.s32.totalorder %s278, 1
        %s280 = scalar_select %p279, %s278, 1
        %s281 = smul.addr %s280, 8
        %s282 = scalar_lea.vmem %s3, %s281
        %p283 = pneg %p92
        %p284 = pneg %p89
        %s285 = smul.u32 %s29, 4
        %s286 = sadd.s32 %s285, %s30
        %s287 = sld [smem:[#allocation5 + %s286]]
        %p288 = scmp.lt.s32.totalorder %s287, 3
        %s289 = scalar_select %p288, %s287, 3
        %s290 = smul.addr %s289, 36
        %s291 = smul.addr %s290, 4
        %s292 = scalar_lea.vmem %s4, %s291
        %p293 = pneg %p124
        %p294 = pneg %p121
        %s295 = smul.u32 %s29, 4
        %s296 = sadd.s32 %s295, %s30
        %s297 = sld [smem:[#allocation5 + %s296]]
        %p298 = scmp.lt.s32.totalorder %s297, 3
        %s299 = scalar_select %p298, %s297, 3
        %s300 = smul.addr %s299, 72
        %s301 = smul.addr %s300, 4
        %s302 = scalar_lea.vmem %s5, %s301
        %p303 = pneg %p156
        %p304 = pneg %p153
        %p305 = pneg %p182
        %p306 = pneg %p179
        %s307 = smul.u32 %s29, 4
        %s308 = sadd.s32 %s307, %s30
        %s309 = sld [smem:[#allocation5 + %s308]]
        %s310 = smul.u32 2, %s29
        %p311 = scmp.lt.s32.totalorder %s309, 3
        %s312 = scalar_select %p311, %s309, 3
        %p313 = scmp.lt.s32.totalorder %s310, 1
        %s314 = scalar_select %p313, %s310, 1
        %s315 = smul.addr %s312, 2
        %s316 = sadd.s32 %s314, %s315
        %s317 = smul.addr %s316, 8
        %s318 = scalar_lea.vmem %s2, %s317
        %s319 = smul.u32 %s29, 4
        %s320 = sadd.s32 %s319, %s30
        %s321 = sld [smem:[#allocation5 + %s320]]
        %s322 = smul.u32 2, %s29
        %s323 = smul.u32 2, %s29
        %p324 = scmp.lt.s32.totalorder %s323, 1
        %s325 = scalar_select %p324, %s323, 1
        %s326 = smul.addr %s325, 8
        %s327 = scalar_lea.vmem %s3, %s326
        %s328 = smul.u32 2, %s29
        %s329 = smul.u32 %s29, 4
        %s330 = sadd.s32 %s329, %s30
        %s331 = sld [smem:[#allocation5 + %s330]]
        %p332 = scmp.lt.s32.totalorder %s331, 3
        %s333 = scalar_select %p332, %s331, 3
        %s334 = smul.addr %s333, 36
        %s335 = smul.addr %s334, 4
        %s336 = scalar_lea.vmem %s4, %s335
        %s337 = smul.u32 %s29, 4
        %s338 = sadd.s32 %s337, %s30
        %s339 = sld [smem:[#allocation5 + %s338]]
        %s340 = smul.u32 %s29, 4
        %s341 = sadd.s32 %s340, %s30
        %s342 = sld [smem:[#allocation5 + %s341]]
        %p343 = scmp.lt.s32.totalorder %s342, 3
        %s344 = scalar_select %p343, %s342, 3
        %s345 = smul.addr %s344, 72
        %s346 = smul.addr %s345, 4
        %s347 = scalar_lea.vmem %s5, %s346
        %s348 = smul.u32 %s29, 4
        %s349 = sadd.s32 %s348, %s30
        %s350 = sld [smem:[#allocation5 + %s349]]
        %s351 = smul.u32 2, %s29
        %p353 = scmp.eq.s32.totalorder %s30, 0
        // Predicated region
        $region37: #{tpu_custom_call.1} parent=35 // pred_check
          %p354 = pneg %p353
        $region38: #{tpu_custom_call.1} parent=35 // pred_check_branch
          %356 = sbr.rel (%p354) target = $region40
        $region39: #{tpu_custom_call.1} parent=35 // pred_region
          %vm357 = vcmask 261120
          %358 = vst.msk [vmem:[#allocation3] sm:$0xff] %vm357, 0.0
          %359 = vst.msk [vmem:[#allocation3 + $0x8] sm:$0xff] %vm357, 0.0
          %v360 = vld [vmem:[%s327] sm:$0xff]
          %v361 = vld [vmem:[%s327 + $0x8] sm:$0xff]
          %v362 = vxor.u32 %v360, 2147483648
          %v363 = vxor.u32 %v361, 2147483648
          %v364 = vmul.f32 %v362, 1.442695
          %v365 = vpow.pop %v364
          %v366 = vmul.f32 %v363, 1.442695
          %v367 = vpow.pop %v366
          %v368 = vadd.f32 %v365, 1.0
          %v369 = vadd.f32 %v367, 1.0
          %v370 = vrcp.pop %v368
          %v371 = vmul.f32 1.0, %v370
          %v372 = vrcp.pop %v369
          %v373 = vmul.f32 1.0, %v372
          %v374 = vmul.f32 %v360, %v371
          %v375 = vmul.f32 %v361, %v373
          %v376 = vpack.c.bf16 %v375, %v374
          %vm377 = vcmp.ge.f32.partialorder %v360, -2.2
          %vm378 = vcmp.ge.f32.partialorder %v361, -2.2
          %vm379 = vcmp.ge.f32.partialorder %v360, -1.8
          %vm380 = vcmp.ge.f32.partialorder %v361, -1.8
          %vm381 = vcmp.ge.f32.partialorder %v360, -1.4
          %vm382 = vcmp.ge.f32.partialorder %v361, -1.4
          %vm383 = vcmp.ge.f32.partialorder %v360, -1.0
          %vm384 = vcmp.ge.f32.partialorder %v361, -1.0
          %vm385 = vcmp.ge.f32.partialorder %v360, -0.6
          %vm386 = vcmp.ge.f32.partialorder %v361, -0.6
          %vm387 = vcmp.ge.f32.partialorder %v360, -0.2
          %vm388 = vcmp.ge.f32.partialorder %v361, -0.2
          %vm389 = vcmp.ge.f32.partialorder %v360, 0.2
          %vm390 = vcmp.ge.f32.partialorder %v361, 0.2
          %vm391 = vcmp.ge.f32.partialorder %v360, 0.6
          %vm392 = vcmp.ge.f32.partialorder %v361, 0.6
          %vm393 = vcmp.ge.f32.partialorder %v360, 1.0
          %vm394 = vcmp.ge.f32.partialorder %v361, 1.0
          %vm395 = vcmp.ge.f32.partialorder %v360, 1.4
          %vm396 = vcmp.ge.f32.partialorder %v361, 1.4
          %vm397 = vcmp.ge.f32.partialorder %v360, 1.8
          %vm398 = vcmp.ge.f32.partialorder %v361, 1.8
          %vm399 = vcmp.ge.f32.partialorder %v360, 2.2
          %vm400 = vcmp.ge.f32.partialorder %v361, 2.2
          %v401 = vsub.f32 %v360, -2.2
          %v402 = vsub.f32 %v361, -2.2
          %v403 = vsub.f32 %v360, -1.8
          %v404 = vsub.f32 %v361, -1.8
          %v405 = vsub.f32 %v360, -1.4
          %v406 = vsub.f32 %v361, -1.4
          %v407 = vsub.f32 %v360, -1.0
          %v408 = vsub.f32 %v361, -1.0
          %v409 = vsub.f32 %v360, -0.6
          %v410 = vsub.f32 %v361, -0.6
          %v411 = vsub.f32 %v360, -0.2
          %v412 = vsub.f32 %v361, -0.2
          %v413 = vsub.f32 %v360, 0.2
          %v414 = vsub.f32 %v361, 0.2
          %v415 = vsub.f32 %v360, 0.6
          %v416 = vsub.f32 %v361, 0.6
          %v417 = vsub.f32 %v360, 1.0
          %v418 = vsub.f32 %v361, 1.0
          %v419 = vsub.f32 %v360, 1.4
          %v420 = vsub.f32 %v361, 1.4
          %v421 = vsub.f32 %v360, 1.8
          %v422 = vsub.f32 %v361, 1.8
          %v423 = vsub.f32 %v360, 2.2
          %v424 = vsub.f32 %v361, 2.2
          %vm425 = vmxor %vm379, 1
          %vm426 = vmxor %vm380, 1
          %vm427 = vmand %vm377, %vm425
          %vm428 = vmand %vm378, %vm426
          %v429 = vsel %vm427, 1, 0
          %v430 = vsel %vm428, 1, 0
          %v431 = vcvt.s32.f32 %v429
          %v432 = vcvt.s32.f32 %v430
          %vm433 = vmxor %vm381, 1
          %vm434 = vmxor %vm382, 1
          %vm435 = vmand %vm379, %vm433
          %vm436 = vmand %vm380, %vm434
          %v437 = vsel %vm435, 1, 0
          %v438 = vsel %vm436, 1, 0
          %v439 = vcvt.s32.f32 %v437
          %v440 = vcvt.s32.f32 %v438
          %vm441 = vmxor %vm383, 1
          %vm442 = vmxor %vm384, 1
          %vm443 = vmand %vm381, %vm441
          %vm444 = vmand %vm382, %vm442
          %v445 = vsel %vm443, 1, 0
          %v446 = vsel %vm444, 1, 0
          %v447 = vcvt.s32.f32 %v445
          %v448 = vcvt.s32.f32 %v446
          %vm449 = vmxor %vm385, 1
          %vm450 = vmxor %vm386, 1
          %vm451 = vmand %vm383, %vm449
          %vm452 = vmand %vm384, %vm450
          %v453 = vsel %vm451, 1, 0
          %v454 = vsel %vm452, 1, 0
          %v455 = vcvt.s32.f32 %v453
          %v456 = vcvt.s32.f32 %v454
          %vm457 = vmxor %vm387, 1
          %vm458 = vmxor %vm388, 1
          %vm459 = vmand %vm385, %vm457
          %vm460 = vmand %vm386, %vm458
          %v461 = vsel %vm459, 1, 0
          %v462 = vsel %vm460, 1, 0
          %v463 = vcvt.s32.f32 %v461
          %v464 = vcvt.s32.f32 %v462
          %vm465 = vmxor %vm389, 1
          %vm466 = vmxor %vm390, 1
          %vm467 = vmand %vm387, %vm465
          %vm468 = vmand %vm388, %vm466
          %v469 = vsel %vm467, 1, 0
          %v470 = vsel %vm468, 1, 0
          %v471 = vcvt.s32.f32 %v469
          %v472 = vcvt.s32.f32 %v470
          %vm473 = vmxor %vm391, 1
          %vm474 = vmxor %vm392, 1
          %vm475 = vmand %vm389, %vm473
          %vm476 = vmand %vm390, %vm474
          %v477 = vsel %vm475, 1, 0
          %v478 = vsel %vm476, 1, 0
          %v479 = vcvt.s32.f32 %v477
          %v480 = vcvt.s32.f32 %v478
          %vm481 = vmxor %vm393, 1
          %vm482 = vmxor %vm394, 1
          %vm483 = vmand %vm391, %vm481
          %vm484 = vmand %vm392, %vm482
          %v485 = vsel %vm483, 1, 0
          %v486 = vsel %vm484, 1, 0
          %v487 = vcvt.s32.f32 %v485
          %v488 = vcvt.s32.f32 %v486
          %vm489 = vmxor %vm395, 1
          %vm490 = vmxor %vm396, 1
          %vm491 = vmand %vm393, %vm489
          %vm492 = vmand %vm394, %vm490
          %v493 = vsel %vm491, 1, 0
          %v494 = vsel %vm492, 1, 0
          %v495 = vcvt.s32.f32 %v493
          %v496 = vcvt.s32.f32 %v494
          %vm497 = vmxor %vm397, 1
          %vm498 = vmxor %vm398, 1
          %vm499 = vmand %vm395, %vm497
          %vm500 = vmand %vm396, %vm498
          %v501 = vsel %vm499, 1, 0
          %v502 = vsel %vm500, 1, 0
          %v503 = vcvt.s32.f32 %v501
          %v504 = vcvt.s32.f32 %v502
          %vm505 = vmxor %vm399, 1
          %vm506 = vmxor %vm400, 1
          %vm507 = vmand %vm397, %vm505
          %vm508 = vmand %vm398, %vm506
          %v509 = vsel %vm507, 1, 0
          %v510 = vsel %vm508, 1, 0
          %v511 = vcvt.s32.f32 %v509
          %v512 = vcvt.s32.f32 %v510
          %v513 = vmul.f32 %v401, 2.5
          %v514 = vmul.f32 %v402, 2.5
          %v515 = vmul.f32 %v513, %v431
          %v516 = vmul.f32 %v514, %v432
          %v517 = vmul.f32 %v405, -2.5
          %v518 = vmul.f32 %v406, -2.5
          %v519 = vmul.f32 %v517, %v439
          %v520 = vmul.f32 %v518, %v440
          %v521 = vadd.f32 %v515, %v519
          %v522 = vadd.f32 %v516, %v520
          %v523 = vmul.f32 %v403, 2.5
          %v524 = vmul.f32 %v404, 2.5
          %v525 = vmul.f32 %v523, %v439
          %v526 = vmul.f32 %v524, %v440
          %v527 = vmul.f32 %v407, -2.5
          %v528 = vmul.f32 %v408, -2.5
          %v529 = vmul.f32 %v527, %v447
          %v530 = vmul.f32 %v528, %v448
          %v531 = vadd.f32 %v525, %v529
          %v532 = vadd.f32 %v526, %v530
          %v533 = vmul.f32 %v405, 2.5
          %v534 = vmul.f32 %v406, 2.5
          %v535 = vmul.f32 %v533, %v447
          %v536 = vmul.f32 %v534, %v448
          %v537 = vmul.f32 %v409, -2.5
          %v538 = vmul.f32 %v410, -2.5
          %v539 = vmul.f32 %v537, %v455
          %v540 = vmul.f32 %v538, %v456
          %v541 = vadd.f32 %v535, %v539
          %v542 = vadd.f32 %v536, %v540
          %v543 = vmul.f32 %v407, 2.5
          %v544 = vmul.f32 %v408, 2.5
          %v545 = vmul.f32 %v543, %v455
          %v546 = vmul.f32 %v544, %v456
          %v547 = vmul.f32 %v411, -2.5
          %v548 = vmul.f32 %v412, -2.5
          %v549 = vmul.f32 %v547, %v463
          %v550 = vmul.f32 %v548, %v464
          %v551 = vadd.f32 %v545, %v549
          %v552 = vadd.f32 %v546, %v550
          %v553 = vmul.f32 %v409, 2.5
          %v554 = vmul.f32 %v410, 2.5
          %v555 = vmul.f32 %v553, %v463
          %v556 = vmul.f32 %v554, %v464
          %v557 = vmul.f32 %v413, -2.5
          %v558 = vmul.f32 %v414, -2.5
          %v559 = vmul.f32 %v557, %v471
          %v560 = vmul.f32 %v558, %v472
          %v561 = vadd.f32 %v555, %v559
          %v562 = vadd.f32 %v556, %v560
          %v563 = vmul.f32 %v411, 2.5
          %v564 = vmul.f32 %v412, 2.5
          %v565 = vmul.f32 %v563, %v471
          %v566 = vmul.f32 %v564, %v472
          %v567 = vmul.f32 %v415, -2.5
          %v568 = vmul.f32 %v416, -2.5
          %v569 = vmul.f32 %v567, %v479
          %v570 = vmul.f32 %v568, %v480
          %v571 = vadd.f32 %v565, %v569
          %v572 = vadd.f32 %v566, %v570
          %v573 = vmul.f32 %v413, 2.5
          %v574 = vmul.f32 %v414, 2.5
          %v575 = vmul.f32 %v573, %v479
          %v576 = vmul.f32 %v574, %v480
          %v577 = vmul.f32 %v417, -2.5
          %v578 = vmul.f32 %v418, -2.5
          %v579 = vmul.f32 %v577, %v487
          %v580 = vmul.f32 %v578, %v488
          %v581 = vadd.f32 %v575, %v579
          %v582 = vadd.f32 %v576, %v580
          %v583 = vmul.f32 %v415, 2.5
          %v584 = vmul.f32 %v416, 2.5
          %v585 = vmul.f32 %v583, %v487
          %v586 = vmul.f32 %v584, %v488
          %v587 = vmul.f32 %v419, -2.5
          %v588 = vmul.f32 %v420, -2.5
          %v589 = vmul.f32 %v587, %v495
          %v590 = vmul.f32 %v588, %v496
          %v591 = vadd.f32 %v585, %v589
          %v592 = vadd.f32 %v586, %v590
          %v593 = vmul.f32 %v417, 2.5
          %v594 = vmul.f32 %v418, 2.5
          %v595 = vmul.f32 %v593, %v495
          %v596 = vmul.f32 %v594, %v496
          %v597 = vmul.f32 %v421, -2.5
          %v598 = vmul.f32 %v422, -2.5
          %v599 = vmul.f32 %v597, %v503
          %v600 = vmul.f32 %v598, %v504
          %v601 = vadd.f32 %v595, %v599
          %v602 = vadd.f32 %v596, %v600
          %v603 = vmul.f32 %v419, 2.5
          %v604 = vmul.f32 %v420, 2.5
          %v605 = vmul.f32 %v603, %v503
          %v606 = vmul.f32 %v604, %v504
          %v607 = vmul.f32 %v423, -2.5
          %v608 = vmul.f32 %v424, -2.5
          %v609 = vmul.f32 %v607, %v511
          %v610 = vmul.f32 %v608, %v512
          %v611 = vadd.f32 %v605, %v609
          %v612 = vadd.f32 %v606, %v610
          %v613 = vmul.f32 %v401, 1.25
          %v614 = vmul.f32 %v402, 1.25
          %v615 = vmul.f32 %v613, %v521
          %v616 = vmul.f32 %v614, %v522
          %v617 = vmul.f32 %v407, -1.25
          %v618 = vmul.f32 %v408, -1.25
          %v619 = vmul.f32 %v617, %v531
          %v620 = vmul.f32 %v618, %v532
          %v621 = vadd.f32 %v615, %v619
          %v622 = vadd.f32 %v616, %v620
          %v623 = vmul.f32 %v403, 1.25
          %v624 = vmul.f32 %v404, 1.25
          %v625 = vmul.f32 %v623, %v531
          %v626 = vmul.f32 %v624, %v532
          %v627 = vmul.f32 %v409, -1.25
          %v628 = vmul.f32 %v410, -1.25
          %v629 = vmul.f32 %v627, %v541
          %v630 = vmul.f32 %v628, %v542
          %v631 = vadd.f32 %v625, %v629
          %v632 = vadd.f32 %v626, %v630
          %v633 = vmul.f32 %v405, 1.25
          %v634 = vmul.f32 %v406, 1.25
          %v635 = vmul.f32 %v633, %v541
          %v636 = vmul.f32 %v634, %v542
          %v637 = vmul.f32 %v411, -1.25
          %v638 = vmul.f32 %v412, -1.25
          %v639 = vmul.f32 %v637, %v551
          %v640 = vmul.f32 %v638, %v552
          %v641 = vadd.f32 %v635, %v639
          %v642 = vadd.f32 %v636, %v640
          %v643 = vmul.f32 %v407, 1.25
          %v644 = vmul.f32 %v408, 1.25
          %v645 = vmul.f32 %v643, %v551
          %v646 = vmul.f32 %v644, %v552
          %v647 = vmul.f32 %v413, -1.25
          %v648 = vmul.f32 %v414, -1.25
          %v649 = vmul.f32 %v647, %v561
          %v650 = vmul.f32 %v648, %v562
          %v651 = vadd.f32 %v645, %v649
          %v652 = vadd.f32 %v646, %v650
          %v653 = vmul.f32 %v409, 1.25
          %v654 = vmul.f32 %v410, 1.25
          %v655 = vmul.f32 %v653, %v561
          %v656 = vmul.f32 %v654, %v562
          %v657 = vmul.f32 %v415, -1.25
          %v658 = vmul.f32 %v416, -1.25
          %v659 = vmul.f32 %v657, %v571
          %v660 = vmul.f32 %v658, %v572
          %v661 = vadd.f32 %v655, %v659
          %v662 = vadd.f32 %v656, %v660
          %v663 = vmul.f32 %v411, 1.25
          %v664 = vmul.f32 %v412, 1.25
          %v665 = vmul.f32 %v663, %v571
          %v666 = vmul.f32 %v664, %v572
          %v667 = vmul.f32 %v417, -1.25
          %v668 = vmul.f32 %v418, -1.25
          %v669 = vmul.f32 %v667, %v581
          %v670 = vmul.f32 %v668, %v582
          %v671 = vadd.f32 %v665, %v669
          %v672 = vadd.f32 %v666, %v670
          %v673 = vmul.f32 %v413, 1.25
          %v674 = vmul.f32 %v414, 1.25
          %v675 = vmul.f32 %v673, %v581
          %v676 = vmul.f32 %v674, %v582
          %v677 = vmul.f32 %v419, -1.25
          %v678 = vmul.f32 %v420, -1.25
          %v679 = vmul.f32 %v677, %v591
          %v680 = vmul.f32 %v678, %v592
          %v681 = vadd.f32 %v675, %v679
          %v682 = vadd.f32 %v676, %v680
          %v683 = vmul.f32 %v415, 1.25
          %v684 = vmul.f32 %v416, 1.25
          %v685 = vmul.f32 %v683, %v591
          %v686 = vmul.f32 %v684, %v592
          %v687 = vmul.f32 %v421, -1.25
          %v688 = vmul.f32 %v422, -1.25
          %v689 = vmul.f32 %v687, %v601
          %v690 = vmul.f32 %v688, %v602
          %v691 = vadd.f32 %v685, %v689
          %v692 = vadd.f32 %v686, %v690
          %v693 = vmul.f32 %v417, 1.25
          %v694 = vmul.f32 %v418, 1.25
          %v695 = vmul.f32 %v693, %v601
          %v696 = vmul.f32 %v694, %v602
          %v697 = vmul.f32 %v423, -1.25
          %v698 = vmul.f32 %v424, -1.25
          %v699 = vmul.f32 %v697, %v611
          %v700 = vmul.f32 %v698, %v612
          %v701 = vadd.f32 %v695, %v699
          %v702 = vadd.f32 %v696, %v700
          %v703 = vmul.f32 %v401, 0.8333333
          %v704 = vmul.f32 %v402, 0.8333333
          %v705 = vmul.f32 %v703, %v621
          %v706 = vmul.f32 %v704, %v622
          %v707 = vmul.f32 %v409, -0.8333333
          %v708 = vmul.f32 %v410, -0.8333333
          %v709 = vmul.f32 %v707, %v631
          %v710 = vmul.f32 %v708, %v632
          %v711 = vadd.f32 %v705, %v709
          %v712 = vadd.f32 %v706, %v710
          %v713 = vmul.f32 %v403, 0.8333333
          %v714 = vmul.f32 %v404, 0.8333333
          %v715 = vmul.f32 %v713, %v631
          %v716 = vmul.f32 %v714, %v632
          %v717 = vmul.f32 %v411, -0.8333333
          %v718 = vmul.f32 %v412, -0.8333333
          %v719 = vmul.f32 %v717, %v641
          %v720 = vmul.f32 %v718, %v642
          %v721 = vadd.f32 %v715, %v719
          %v722 = vadd.f32 %v716, %v720
          %v723 = vmul.f32 %v405, 0.8333333
          %v724 = vmul.f32 %v406, 0.8333333
          %v725 = vmul.f32 %v723, %v641
          %v726 = vmul.f32 %v724, %v642
          %v727 = vmul.f32 %v413, -0.8333333
          %v728 = vmul.f32 %v414, -0.8333333
          %v729 = vmul.f32 %v727, %v651
          %v730 = vmul.f32 %v728, %v652
          %v731 = vadd.f32 %v725, %v729
          %v732 = vadd.f32 %v726, %v730
          %v733 = vmul.f32 %v407, 0.8333333
          %v734 = vmul.f32 %v408, 0.8333333
          %v735 = vmul.f32 %v733, %v651
          %v736 = vmul.f32 %v734, %v652
          %v737 = vmul.f32 %v415, -0.8333333
          %v738 = vmul.f32 %v416, -0.8333333
          %v739 = vmul.f32 %v737, %v661
          %v740 = vmul.f32 %v738, %v662
          %v741 = vadd.f32 %v735, %v739
          %v742 = vadd.f32 %v736, %v740
          %v743 = vmul.f32 %v409, 0.8333333
          %v744 = vmul.f32 %v410, 0.8333333
          %v745 = vmul.f32 %v743, %v661
          %v746 = vmul.f32 %v744, %v662
          %v747 = vmul.f32 %v417, -0.8333333
          %v748 = vmul.f32 %v418, -0.8333333
          %v749 = vmul.f32 %v747, %v671
          %v750 = vmul.f32 %v748, %v672
          %v751 = vadd.f32 %v745, %v749
          %v752 = vadd.f32 %v746, %v750
          %v753 = vmul.f32 %v411, 0.8333333
          %v754 = vmul.f32 %v412, 0.8333333
          %v755 = vmul.f32 %v753, %v671
          %v756 = vmul.f32 %v754, %v672
          %v757 = vmul.f32 %v419, -0.8333333
          %v758 = vmul.f32 %v420, -0.8333333
          %v759 = vmul.f32 %v757, %v681
          %v760 = vmul.f32 %v758, %v682
          %v761 = vadd.f32 %v755, %v759
          %v762 = vadd.f32 %v756, %v760
          %v763 = vmul.f32 %v413, 0.8333333
          %v764 = vmul.f32 %v414, 0.8333333
          %v765 = vmul.f32 %v763, %v681
          %v766 = vmul.f32 %v764, %v682
          %v767 = vmul.f32 %v421, -0.8333333
          %v768 = vmul.f32 %v422, -0.8333333
          %v769 = vmul.f32 %v767, %v691
          %v770 = vmul.f32 %v768, %v692
          %v771 = vadd.f32 %v765, %v769
          %v772 = vadd.f32 %v766, %v770
          %v773 = vmul.f32 %v415, 0.8333333
          %v774 = vmul.f32 %v416, 0.8333333
          %v775 = vmul.f32 %v773, %v691
          %v776 = vmul.f32 %v774, %v692
          %v777 = vmul.f32 %v423, -0.8333333
          %v778 = vmul.f32 %v424, -0.8333333
          %v779 = vmul.f32 %v777, %v701
          %v780 = vmul.f32 %v778, %v702
          %v781 = vadd.f32 %v775, %v779
          %v782 = vadd.f32 %v776, %v780
          %v783 = vpack.c.bf16 %v712, %v711
          %v784 = vpack.c.bf16 %v722, %v721
          %v785 = vpack.c.bf16 %v732, %v731
          %v786 = vpack.c.bf16 %v742, %v741
          %v787 = vpack.c.bf16 %v752, %v751
          %v788 = vpack.c.bf16 %v762, %v761
          %v789 = vpack.c.bf16 %v772, %v771
          %v790 = vpack.c.bf16 %v782, %v781
          %792 = vrot.lane.b32.xlu0 %v783, 32
          %v793 = vpop.permute.xlu0 %792
          %795 = vrot.lane.b32.xlu0 %v784, 64
          %v796 = vpop.permute.xlu0 %795
          %798 = vrot.lane.b32.xlu0 %v785, 96
          %v799 = vpop.permute.xlu0 %798
          %801 = vrot.lane.b32.xlu0 %v787, 32
          %v802 = vpop.permute.xlu0 %801
          %804 = vrot.lane.b32.xlu0 %v788, 64
          %v805 = vpop.permute.xlu0 %804
          %807 = vrot.lane.b32.xlu0 %v789, 96
          %v808 = vpop.permute.xlu0 %807
          %v811 = vsel %vm357, %v376, %v793
          %vm812 = vcmask 523264
          %v814 = vsel %vm812, %v811, %v796
          %vm815 = vcmask 785408
          %v817 = vsel %vm815, %v814, %v799
          %v820 = vsel %vm357, %v786, %v802
          %v822 = vsel %vm812, %v820, %v805
          %v824 = vsel %vm815, %v822, %v808
          %v828 = vunpack.c.l.b16 %v817
          %v829 = vunpack.c.l.b16 %v824
          %v830 = vunpack.c.l.b16 %v790
          %v831 = vunpack.c.h.b16 %v817
          %v832 = vunpack.c.h.b16 %v824
          %v833 = vunpack.c.h.b16 %v790
          %v834 = vpack.c.b16 %v829, %v828
          %v835 = vpack.c.b16 %v830, %v830
          %v836 = vpack.c.b16 %v832, %v831
          %v837 = vpack.c.b16 %v833, %v833
          %842 = vst [vmem:[#allocation2] sm:$0xff] %v834
          %vm843 = vcmask 257024
          %844 = vst.msk [vmem:[#allocation2 + $0x8] sm:$0xf] %vm843, %v835
          %845 = vst [vmem:[#allocation2 + $0xc] sm:$0xff] %v836
          %846 = vst.msk [vmem:[#allocation2 + $0x14] sm:$0xf] %vm843, %v837
        $region40: #{tpu_custom_call.1} parent=35 // pred_fallthru
          _
        %s847 = sld [smem:[#allocation6 + %s29]]
        %p848 = scmp.lt.s32.totalorder %s30, %s847
        // Predicated region
        $region41: #{tpu_custom_call.1} parent=35 // pred_check
          %p849 = pneg %p848
        $region42: #{tpu_custom_call.1} parent=35 // pred_check_branch
          %851 = sbr.rel (%p849) target = $region44
        $region43: #{tpu_custom_call.1} parent=35 // pred_region
          %v852 = vld [vmem:[#allocation2] sm:$0xff]
          %v853 = vld [vmem:[#allocation2 + $0x8] sm:$0xf]
          %v854 = vld [vmem:[#allocation2 + $0xc] sm:$0xff]
          %v855 = vld [vmem:[#allocation2 + $0x14] sm:$0xf]
          %v856 = vld [vmem:[%s336] sm:$0xf]
          %v857 = vld [vmem:[%s336 + $0x4] sm:$0xf]
          %v858 = vld [vmem:[%s336 + $0x8] sm:$0xf]
          %v859 = vld [vmem:[%s336 + $0xc] sm:$0xf]
          %v860 = vld [vmem:[%s336 + $0x10] sm:$0xf]
          %v861 = vld [vmem:[%s336 + $0x14] sm:$0xf]
          %v862 = vld [vmem:[%s336 + $0x18] sm:$0xf]
          %v863 = vld [vmem:[%s336 + $0x1c] sm:$0xf]
          %v864 = vld [vmem:[%s336 + $0x20] sm:$0xf]
          %v865 = vld [vmem:[%s336 + $0x24] sm:$0xf]
          %v866 = vld [vmem:[%s336 + $0x28] sm:$0xf]
          %v867 = vld [vmem:[%s336 + $0x2c] sm:$0xf]
          %v868 = vld [vmem:[%s336 + $0x30] sm:$0xf]
          %v869 = vld [vmem:[%s336 + $0x34] sm:$0xf]
          %v870 = vld [vmem:[%s336 + $0x38] sm:$0xf]
          %v871 = vld [vmem:[%s336 + $0x3c] sm:$0xf]
          %v872 = vld [vmem:[%s336 + $0x40] sm:$0xf]
          %v873 = vld [vmem:[%s336 + $0x44] sm:$0xf]
          %v874 = vld [vmem:[%s336 + $0x48] sm:$0xf]
          %v875 = vld [vmem:[%s336 + $0x4c] sm:$0xf]
          %v876 = vld [vmem:[%s336 + $0x50] sm:$0xf]
          %v877 = vld [vmem:[%s336 + $0x54] sm:$0xf]
          %v878 = vld [vmem:[%s336 + $0x58] sm:$0xf]
          %v879 = vld [vmem:[%s336 + $0x5c] sm:$0xf]
          %v880 = vld [vmem:[%s336 + $0x60] sm:$0xf]
          %v881 = vld [vmem:[%s336 + $0x64] sm:$0xf]
          %v882 = vld [vmem:[%s336 + $0x68] sm:$0xf]
          %v883 = vld [vmem:[%s336 + $0x6c] sm:$0xf]
          %v884 = vld [vmem:[%s336 + $0x70] sm:$0xf]
          %v885 = vld [vmem:[%s336 + $0x74] sm:$0xf]
          %v886 = vld [vmem:[%s336 + $0x78] sm:$0xf]
          %v887 = vld [vmem:[%s336 + $0x7c] sm:$0xf]
          %v888 = vld [vmem:[%s336 + $0x80] sm:$0xf]
          %v889 = vld [vmem:[%s336 + $0x84] sm:$0xf]
          %v890 = vld [vmem:[%s336 + $0x88] sm:$0xf]
          %v891 = vld [vmem:[%s336 + $0x8c] sm:$0xf]
          %v896 = vunpack.c.l.b16 %v852
          %v897 = vunpack.c.h.b16 %v852
          %v898 = vunpack.c.l.b16 %v853
          %v899 = vunpack.c.l.b16 %v854
          %v900 = vunpack.c.h.b16 %v854
          %v901 = vunpack.c.l.b16 %v855
          %v902 = vpack.c.b16 %v899, %v896
          %v903 = vpack.c.b16 %v900, %v897
          %v904 = vpack.c.b16 %v901, %v898
          %v943 = vunpack.c.l.b16 %v856
          %v944 = vunpack.c.l.b16 %v857
          %v945 = vunpack.c.l.b16 %v858
          %v946 = vunpack.c.l.b16 %v859
          %v947 = vunpack.c.l.b16 %v860
          %v948 = vunpack.c.l.b16 %v861
          %v949 = vunpack.c.l.b16 %v862
          %v950 = vunpack.c.l.b16 %v863
          %v951 = vunpack.c.l.b16 %v864
          %v952 = vunpack.c.l.b16 %v865
          %v953 = vunpack.c.l.b16 %v866
          %v954 = vunpack.c.l.b16 %v867
          %v955 = vunpack.c.l.b16 %v868
          %v956 = vunpack.c.l.b16 %v869
          %v957 = vunpack.c.l.b16 %v870
          %v958 = vunpack.c.l.b16 %v871
          %v959 = vunpack.c.l.b16 %v872
          %v960 = vunpack.c.l.b16 %v873
          %v961 = vunpack.c.l.b16 %v874
          %v962 = vunpack.c.l.b16 %v875
          %v963 = vunpack.c.l.b16 %v876
          %v964 = vunpack.c.l.b16 %v877
          %v965 = vunpack.c.l.b16 %v878
          %v966 = vunpack.c.l.b16 %v879
          %v967 = vunpack.c.l.b16 %v880
          %v968 = vunpack.c.l.b16 %v881
          %v969 = vunpack.c.l.b16 %v882
          %v970 = vunpack.c.l.b16 %v883
          %v971 = vunpack.c.l.b16 %v884
          %v972 = vunpack.c.l.b16 %v885
          %v973 = vunpack.c.l.b16 %v886
          %v974 = vunpack.c.l.b16 %v887
          %v975 = vunpack.c.l.b16 %v888
          %v976 = vunpack.c.l.b16 %v889
          %v977 = vunpack.c.l.b16 %v890
          %v978 = vunpack.c.l.b16 %v891
          %v979 = vpack.c.b16 %v944, %v943
          %v980 = vpack.c.b16 %v946, %v945
          %v981 = vpack.c.b16 %v948, %v947
          %v982 = vpack.c.b16 %v950, %v949
          %v983 = vpack.c.b16 %v952, %v951
          %v984 = vpack.c.b16 %v954, %v953
          %v985 = vpack.c.b16 %v956, %v955
          %v986 = vpack.c.b16 %v958, %v957
          %v987 = vpack.c.b16 %v960, %v959
          %v988 = vpack.c.b16 %v962, %v961
          %v989 = vpack.c.b16 %v964, %v963
          %v990 = vpack.c.b16 %v966, %v965
          %v991 = vpack.c.b16 %v968, %v967
          %v992 = vpack.c.b16 %v970, %v969
          %v993 = vpack.c.b16 %v972, %v971
          %v994 = vpack.c.b16 %v974, %v973
          %v995 = vpack.c.b16 %v976, %v975
          %v996 = vpack.c.b16 %v978, %v977
          %vm1015 = vcmask 261120
          %v1017 = vsel %vm1015, %v904, 0
          %1019 = vmatprep.subr.bf16.mxu0 0
          %1020 = vmatpush1.bf16.msra.mxu0 %v986
          %1021 = vmatprep.subr.bf16.mxu0 0
          %1022 = vmatpush1.bf16.msra.mxu0 %v985
          %1023 = vmatprep.subr.bf16.mxu0 0
          %1024 = vmatpush1.bf16.msra.mxu0 %v984
          %1025 = vmatprep.subr.bf16.mxu0 0
          %1026 = vmatpush1.bf16.msra.mxu0 %v983
          %1027 = vmatprep.subr.bf16.mxu0 0
          %1028 = vmatpush1.bf16.msra.mxu0 %v982
          %1029 = vmatprep.subr.bf16.mxu0 0
          %1030 = vmatpush1.bf16.msra.mxu0 %v981
          %1031 = vmatprep.subr.bf16.mxu0 0
          %1032 = vmatpush1.bf16.msra.mxu0 %v980
          %1033 = vmatprep.subr.bf16.mxu0 0
          %1034 = vmatpush1.bf16.msra.mxu0 %v979
          %1035 = vmatprep.subr.bf16.mxu0 0
          %1036 = vmatpush2.bf16.msra.mxu0 %v994
          %1037 = vmatprep.subr.bf16.mxu0 0
          %1038 = vmatpush2.bf16.msra.mxu0 %v993
          %1039 = vmatprep.subr.bf16.mxu0 0
          %1040 = vmatpush2.bf16.msra.mxu0 %v992
          %1041 = vmatprep.subr.bf16.mxu0 0
          %1042 = vmatpush2.bf16.msra.mxu0 %v991
          %1043 = vmatprep.subr.bf16.mxu0 0
          %1044 = vmatpush2.bf16.msra.mxu0 %v990
          %1045 = vmatprep.subr.bf16.mxu0 0
          %1046 = vmatpush2.bf16.msra.mxu0 %v989
          %1047 = vmatprep.subr.bf16.mxu0 0
          %1048 = vmatpush2.bf16.msra.mxu0 %v988
          %1049 = vmatprep.subr.bf16.mxu0 0
          %1050 = vmatpush2.bf16.msra.mxu0 %v987
          %1051 = vmatprep.mubr.bf16.mxu0 %v903
          %1052 = vmatmul.mubr.bf16.gmra.mxu0 %v902
          %v1053 = vpop.f32.mrf.mxu0
          %v1054 = vadd.f32 0.0, %v1053
          %v1055 = vpop.f32.mrf.mxu0
          %v1056 = vpop.f32.mrf.mxu0
          %v1057 = vadd.f32 0.0, %v1056
          %v1058 = vpop.f32.mrf.mxu0
          %1059 = vdwg.mxu0
          %1060 = vmatprep.subr.bf16.mxu0 0
          %1061 = vmatpush1.bf16.msra.mxu0 0
          %1062 = vmatprep.subr.bf16.mxu0 0
          %1063 = vmatpush1.bf16.msra.mxu0 0
          %1064 = vmatprep.subr.bf16.mxu0 0
          %1065 = vmatpush1.bf16.msra.mxu0 0
          %1066 = vmatprep.subr.bf16.mxu0 0
          %1067 = vmatpush1.bf16.msra.mxu0 0
          %1068 = vmatprep.subr.bf16.mxu0 0
          %1069 = vmatpush1.bf16.msra.mxu0 0
          %1070 = vmatprep.subr.bf16.mxu0 0
          %1071 = vmatpush1.bf16.msra.mxu0 0
          %1072 = vmatprep.subr.bf16.mxu0 0
          %1073 = vmatpush1.bf16.msra.mxu0 %v996
          %1074 = vmatprep.subr.bf16.mxu0 0
          %1075 = vmatpush1.bf16.msra.mxu0 %v995
          %1076 = vmatprep.subr.bf16.mxu0 0
          %1077 = vmatpush2.bf16.msra.mxu0 0
          %1078 = vmatprep.subr.bf16.mxu0 0
          %1079 = vmatpush2.bf16.msra.mxu0 0
          %1080 = vmatprep.subr.bf16.mxu0 0
          %1081 = vmatpush2.bf16.msra.mxu0 0
          %1082 = vmatprep.subr.bf16.mxu0 0
          %1083 = vmatpush2.bf16.msra.mxu0 0
          %1084 = vmatprep.subr.bf16.mxu0 0
          %1085 = vmatpush2.bf16.msra.mxu0 0
          %1086 = vmatprep.subr.bf16.mxu0 0
          %1087 = vmatpush2.bf16.msra.mxu0 0
          %1088 = vmatprep.subr.bf16.mxu0 0
          %1089 = vmatpush2.bf16.msra.mxu0 0
          %1090 = vmatprep.subr.bf16.mxu0 0
          %1091 = vmatpush2.bf16.msra.mxu0 0
          %1092 = vmatprep.mubr.bf16.mxu0 0
          %1093 = vmatmul.mubr.bf16.gmra.mxu0 %v1017
          %v1094 = vpop.f32.mrf.mxu0
          %v1095 = vadd.f32 %v1054, %v1094
          %v1096 = vpop.f32.mrf.mxu0
          %v1097 = vpop.f32.mrf.mxu0
          %v1098 = vadd.f32 %v1057, %v1097
          %v1099 = vpop.f32.mrf.mxu0
          %1100 = vdwg.mxu0
          %1103 = vrot.lane.b32.xlu0 %v1095, 64
          %v1104 = vpop.permute.xlu0 %1103
          %1105 = vrot.lane.b32.xlu0 %v1098, 64
          %v1106 = vpop.permute.xlu0 %1105
          %v1109 = vmul.f32 %v1095, %v1104
          %v1110 = vmul.f32 %v1098, %v1106
          %v1111 = vxor.u32 %v1109, 2147483648
          %v1112 = vxor.u32 %v1110, 2147483648
          %v1113 = vmul.f32 %v1111, 1.442695
          %v1114 = vpow.pop %v1113
          %v1115 = vmul.f32 %v1112, 1.442695
          %v1116 = vpow.pop %v1115
          %v1117 = vadd.f32 %v1114, 1.0
          %v1118 = vadd.f32 %v1116, 1.0
          %v1119 = vrcp.pop %v1117
          %v1120 = vmul.f32 1.0, %v1119
          %v1121 = vrcp.pop %v1118
          %v1122 = vmul.f32 1.0, %v1121
          %v1123 = vmul.f32 %v1109, %v1120
          %v1124 = vmul.f32 %v1110, %v1122
          %v1125 = vpack.c.bf16 %v1124, %v1123
          %vm1126 = vcmp.ge.f32.partialorder %v1109, -2.2
          %vm1127 = vcmp.ge.f32.partialorder %v1110, -2.2
          %vm1128 = vcmp.ge.f32.partialorder %v1109, -1.8
          %vm1129 = vcmp.ge.f32.partialorder %v1110, -1.8
          %vm1130 = vcmp.ge.f32.partialorder %v1109, -1.4
          %vm1131 = vcmp.ge.f32.partialorder %v1110, -1.4
          %vm1132 = vcmp.ge.f32.partialorder %v1109, -1.0
          %vm1133 = vcmp.ge.f32.partialorder %v1110, -1.0
          %vm1134 = vcmp.ge.f32.partialorder %v1109, -0.6
          %vm1135 = vcmp.ge.f32.partialorder %v1110, -0.6
          %vm1136 = vcmp.ge.f32.partialorder %v1109, -0.2
          %vm1137 = vcmp.ge.f32.partialorder %v1110, -0.2
          %vm1138 = vcmp.ge.f32.partialorder %v1109, 0.2
          %vm1139 = vcmp.ge.f32.partialorder %v1110, 0.2
          %vm1140 = vcmp.ge.f32.partialorder %v1109, 0.6
          %vm1141 = vcmp.ge.f32.partialorder %v1110, 0.6
          %vm1142 = vcmp.ge.f32.partialorder %v1109, 1.0
          %vm1143 = vcmp.ge.f32.partialorder %v1110, 1.0
          %vm1144 = vcmp.ge.f32.partialorder %v1109, 1.4
          %vm1145 = vcmp.ge.f32.partialorder %v1110, 1.4
          %vm1146 = vcmp.ge.f32.partialorder %v1109, 1.8
          %vm1147 = vcmp.ge.f32.partialorder %v1110, 1.8
          %vm1148 = vcmp.ge.f32.partialorder %v1109, 2.2
          %vm1149 = vcmp.ge.f32.partialorder %v1110, 2.2
          %v1150 = vsub.f32 %v1109, -2.2
          %v1151 = vsub.f32 %v1110, -2.2
          %v1152 = vsub.f32 %v1109, -1.8
          %v1153 = vsub.f32 %v1110, -1.8
          %v1154 = vsub.f32 %v1109, -1.4
          %v1155 = vsub.f32 %v1110, -1.4
          %v1156 = vsub.f32 %v1109, -1.0
          %v1157 = vsub.f32 %v1110, -1.0
          %v1158 = vsub.f32 %v1109, -0.6
          %v1159 = vsub.f32 %v1110, -0.6
          %v1160 = vsub.f32 %v1109, -0.2
          %v1161 = vsub.f32 %v1110, -0.2
          %v1162 = vsub.f32 %v1109, 0.2
          %v1163 = vsub.f32 %v1110, 0.2
          %v1164 = vsub.f32 %v1109, 0.6
          %v1165 = vsub.f32 %v1110, 0.6
          %v1166 = vsub.f32 %v1109, 1.0
          %v1167 = vsub.f32 %v1110, 1.0
          %v1168 = vsub.f32 %v1109, 1.4
          %v1169 = vsub.f32 %v1110, 1.4
          %v1170 = vsub.f32 %v1109, 1.8
          %v1171 = vsub.f32 %v1110, 1.8
          %v1172 = vsub.f32 %v1109, 2.2
          %v1173 = vsub.f32 %v1110, 2.2
          %vm1174 = vmxor %vm1128, 1
          %vm1175 = vmxor %vm1129, 1
          %vm1176 = vmand %vm1126, %vm1174
          %vm1177 = vmand %vm1127, %vm1175
          %v1178 = vsel %vm1176, 1, 0
          %v1179 = vsel %vm1177, 1, 0
          %v1180 = vcvt.s32.f32 %v1178
          %v1181 = vcvt.s32.f32 %v1179
          %vm1182 = vmxor %vm1130, 1
          %vm1183 = vmxor %vm1131, 1
          %vm1184 = vmand %vm1128, %vm1182
          %vm1185 = vmand %vm1129, %vm1183
          %v1186 = vsel %vm1184, 1, 0
          %v1187 = vsel %vm1185, 1, 0
          %v1188 = vcvt.s32.f32 %v1186
          %v1189 = vcvt.s32.f32 %v1187
          %vm1190 = vmxor %vm1132, 1
          %vm1191 = vmxor %vm1133, 1
          %vm1192 = vmand %vm1130, %vm1190
          %vm1193 = vmand %vm1131, %vm1191
          %v1194 = vsel %vm1192, 1, 0
          %v1195 = vsel %vm1193, 1, 0
          %v1196 = vcvt.s32.f32 %v1194
          %v1197 = vcvt.s32.f32 %v1195
          %vm1198 = vmxor %vm1134, 1
          %vm1199 = vmxor %vm1135, 1
          %vm1200 = vmand %vm1132, %vm1198
          %vm1201 = vmand %vm1133, %vm1199
          %v1202 = vsel %vm1200, 1, 0
          %v1203 = vsel %vm1201, 1, 0
          %v1204 = vcvt.s32.f32 %v1202
          %v1205 = vcvt.s32.f32 %v1203
          %vm1206 = vmxor %vm1136, 1
          %vm1207 = vmxor %vm1137, 1
          %vm1208 = vmand %vm1134, %vm1206
          %vm1209 = vmand %vm1135, %vm1207
          %v1210 = vsel %vm1208, 1, 0
          %v1211 = vsel %vm1209, 1, 0
          %v1212 = vcvt.s32.f32 %v1210
          %v1213 = vcvt.s32.f32 %v1211
          %vm1214 = vmxor %vm1138, 1
          %vm1215 = vmxor %vm1139, 1
          %vm1216 = vmand %vm1136, %vm1214
          %vm1217 = vmand %vm1137, %vm1215
          %v1218 = vsel %vm1216, 1, 0
          %v1219 = vsel %vm1217, 1, 0
          %v1220 = vcvt.s32.f32 %v1218
          %v1221 = vcvt.s32.f32 %v1219
          %vm1222 = vmxor %vm1140, 1
          %vm1223 = vmxor %vm1141, 1
          %vm1224 = vmand %vm1138, %vm1222
          %vm1225 = vmand %vm1139, %vm1223
          %v1226 = vsel %vm1224, 1, 0
          %v1227 = vsel %vm1225, 1, 0
          %v1228 = vcvt.s32.f32 %v1226
          %v1229 = vcvt.s32.f32 %v1227
          %vm1230 = vmxor %vm1142, 1
          %vm1231 = vmxor %vm1143, 1
          %vm1232 = vmand %vm1140, %vm1230
          %vm1233 = vmand %vm1141, %vm1231
          %v1234 = vsel %vm1232, 1, 0
          %v1235 = vsel %vm1233, 1, 0
          %v1236 = vcvt.s32.f32 %v1234
          %v1237 = vcvt.s32.f32 %v1235
          %vm1238 = vmxor %vm1144, 1
          %vm1239 = vmxor %vm1145, 1
          %vm1240 = vmand %vm1142, %vm1238
          %vm1241 = vmand %vm1143, %vm1239
          %v1242 = vsel %vm1240, 1, 0
          %v1243 = vsel %vm1241, 1, 0
          %v1244 = vcvt.s32.f32 %v1242
          %v1245 = vcvt.s32.f32 %v1243
          %vm1246 = vmxor %vm1146, 1
          %vm1247 = vmxor %vm1147, 1
          %vm1248 = vmand %vm1144, %vm1246
          %vm1249 = vmand %vm1145, %vm1247
          %v1250 = vsel %vm1248, 1, 0
          %v1251 = vsel %vm1249, 1, 0
          %v1252 = vcvt.s32.f32 %v1250
          %v1253 = vcvt.s32.f32 %v1251
          %vm1254 = vmxor %vm1148, 1
          %vm1255 = vmxor %vm1149, 1
          %vm1256 = vmand %vm1146, %vm1254
          %vm1257 = vmand %vm1147, %vm1255
          %v1258 = vsel %vm1256, 1, 0
          %v1259 = vsel %vm1257, 1, 0
          %v1260 = vcvt.s32.f32 %v1258
          %v1261 = vcvt.s32.f32 %v1259
          %v1262 = vmul.f32 %v1150, 2.5
          %v1263 = vmul.f32 %v1151, 2.5
          %v1264 = vmul.f32 %v1262, %v1180
          %v1265 = vmul.f32 %v1263, %v1181
          %v1266 = vmul.f32 %v1154, -2.5
          %v1267 = vmul.f32 %v1155, -2.5
          %v1268 = vmul.f32 %v1266, %v1188
          %v1269 = vmul.f32 %v1267, %v1189
          %v1270 = vadd.f32 %v1264, %v1268
          %v1271 = vadd.f32 %v1265, %v1269
          %v1272 = vmul.f32 %v1152, 2.5
          %v1273 = vmul.f32 %v1153, 2.5
          %v1274 = vmul.f32 %v1272, %v1188
          %v1275 = vmul.f32 %v1273, %v1189
          %v1276 = vmul.f32 %v1156, -2.5
          %v1277 = vmul.f32 %v1157, -2.5
          %v1278 = vmul.f32 %v1276, %v1196
          %v1279 = vmul.f32 %v1277, %v1197
          %v1280 = vadd.f32 %v1274, %v1278
          %v1281 = vadd.f32 %v1275, %v1279
          %v1282 = vmul.f32 %v1154, 2.5
          %v1283 = vmul.f32 %v1155, 2.5
          %v1284 = vmul.f32 %v1282, %v1196
          %v1285 = vmul.f32 %v1283, %v1197
          %v1286 = vmul.f32 %v1158, -2.5
          %v1287 = vmul.f32 %v1159, -2.5
          %v1288 = vmul.f32 %v1286, %v1204
          %v1289 = vmul.f32 %v1287, %v1205
          %v1290 = vadd.f32 %v1284, %v1288
          %v1291 = vadd.f32 %v1285, %v1289
          %v1292 = vmul.f32 %v1156, 2.5
          %v1293 = vmul.f32 %v1157, 2.5
          %v1294 = vmul.f32 %v1292, %v1204
          %v1295 = vmul.f32 %v1293, %v1205
          %v1296 = vmul.f32 %v1160, -2.5
          %v1297 = vmul.f32 %v1161, -2.5
          %v1298 = vmul.f32 %v1296, %v1212
          %v1299 = vmul.f32 %v1297, %v1213
          %v1300 = vadd.f32 %v1294, %v1298
          %v1301 = vadd.f32 %v1295, %v1299
          %v1302 = vmul.f32 %v1158, 2.5
          %v1303 = vmul.f32 %v1159, 2.5
          %v1304 = vmul.f32 %v1302, %v1212
          %v1305 = vmul.f32 %v1303, %v1213
          %v1306 = vmul.f32 %v1162, -2.5
          %v1307 = vmul.f32 %v1163, -2.5
          %v1308 = vmul.f32 %v1306, %v1220
          %v1309 = vmul.f32 %v1307, %v1221
          %v1310 = vadd.f32 %v1304, %v1308
          %v1311 = vadd.f32 %v1305, %v1309
          %v1312 = vmul.f32 %v1160, 2.5
          %v1313 = vmul.f32 %v1161, 2.5
          %v1314 = vmul.f32 %v1312, %v1220
          %v1315 = vmul.f32 %v1313, %v1221
          %v1316 = vmul.f32 %v1164, -2.5
          %v1317 = vmul.f32 %v1165, -2.5
          %v1318 = vmul.f32 %v1316, %v1228
          %v1319 = vmul.f32 %v1317, %v1229
          %v1320 = vadd.f32 %v1314, %v1318
          %v1321 = vadd.f32 %v1315, %v1319
          %v1322 = vmul.f32 %v1162, 2.5
          %v1323 = vmul.f32 %v1163, 2.5
          %v1324 = vmul.f32 %v1322, %v1228
          %v1325 = vmul.f32 %v1323, %v1229
          %v1326 = vmul.f32 %v1166, -2.5
          %v1327 = vmul.f32 %v1167, -2.5
          %v1328 = vmul.f32 %v1326, %v1236
          %v1329 = vmul.f32 %v1327, %v1237
          %v1330 = vadd.f32 %v1324, %v1328
          %v1331 = vadd.f32 %v1325, %v1329
          %v1332 = vmul.f32 %v1164, 2.5
          %v1333 = vmul.f32 %v1165, 2.5
          %v1334 = vmul.f32 %v1332, %v1236
          %v1335 = vmul.f32 %v1333, %v1237
          %v1336 = vmul.f32 %v1168, -2.5
          %v1337 = vmul.f32 %v1169, -2.5
          %v1338 = vmul.f32 %v1336, %v1244
          %v1339 = vmul.f32 %v1337, %v1245
          %v1340 = vadd.f32 %v1334, %v1338
          %v1341 = vadd.f32 %v1335, %v1339
          %v1342 = vmul.f32 %v1166, 2.5
          %v1343 = vmul.f32 %v1167, 2.5
          %v1344 = vmul.f32 %v1342, %v1244
          %v1345 = vmul.f32 %v1343, %v1245
          %v1346 = vmul.f32 %v1170, -2.5
          %v1347 = vmul.f32 %v1171, -2.5
          %v1348 = vmul.f32 %v1346, %v1252
          %v1349 = vmul.f32 %v1347, %v1253
          %v1350 = vadd.f32 %v1344, %v1348
          %v1351 = vadd.f32 %v1345, %v1349
          %v1352 = vmul.f32 %v1168, 2.5
          %v1353 = vmul.f32 %v1169, 2.5
          %v1354 = vmul.f32 %v1352, %v1252
          %v1355 = vmul.f32 %v1353, %v1253
          %v1356 = vmul.f32 %v1172, -2.5
          %v1357 = vmul.f32 %v1173, -2.5
          %v1358 = vmul.f32 %v1356, %v1260
          %v1359 = vmul.f32 %v1357, %v1261
          %v1360 = vadd.f32 %v1354, %v1358
          %v1361 = vadd.f32 %v1355, %v1359
          %v1362 = vmul.f32 %v1150, 1.25
          %v1363 = vmul.f32 %v1151, 1.25
          %v1364 = vmul.f32 %v1362, %v1270
          %v1365 = vmul.f32 %v1363, %v1271
          %v1366 = vmul.f32 %v1156, -1.25
          %v1367 = vmul.f32 %v1157, -1.25
          %v1368 = vmul.f32 %v1366, %v1280
          %v1369 = vmul.f32 %v1367, %v1281
          %v1370 = vadd.f32 %v1364, %v1368
          %v1371 = vadd.f32 %v1365, %v1369
          %v1372 = vmul.f32 %v1152, 1.25
          %v1373 = vmul.f32 %v1153, 1.25
          %v1374 = vmul.f32 %v1372, %v1280
          %v1375 = vmul.f32 %v1373, %v1281
          %v1376 = vmul.f32 %v1158, -1.25
          %v1377 = vmul.f32 %v1159, -1.25
          %v1378 = vmul.f32 %v1376, %v1290
          %v1379 = vmul.f32 %v1377, %v1291
          %v1380 = vadd.f32 %v1374, %v1378
          %v1381 = vadd.f32 %v1375, %v1379
          %v1382 = vmul.f32 %v1154, 1.25
          %v1383 = vmul.f32 %v1155, 1.25
          %v1384 = vmul.f32 %v1382, %v1290
          %v1385 = vmul.f32 %v1383, %v1291
          %v1386 = vmul.f32 %v1160, -1.25
          %v1387 = vmul.f32 %v1161, -1.25
          %v1388 = vmul.f32 %v1386, %v1300
          %v1389 = vmul.f32 %v1387, %v1301
          %v1390 = vadd.f32 %v1384, %v1388
          %v1391 = vadd.f32 %v1385, %v1389
          %v1392 = vmul.f32 %v1156, 1.25
          %v1393 = vmul.f32 %v1157, 1.25
          %v1394 = vmul.f32 %v1392, %v1300
          %v1395 = vmul.f32 %v1393, %v1301
          %v1396 = vmul.f32 %v1162, -1.25
          %v1397 = vmul.f32 %v1163, -1.25
          %v1398 = vmul.f32 %v1396, %v1310
          %v1399 = vmul.f32 %v1397, %v1311
          %v1400 = vadd.f32 %v1394, %v1398
          %v1401 = vadd.f32 %v1395, %v1399
          %v1402 = vmul.f32 %v1158, 1.25
          %v1403 = vmul.f32 %v1159, 1.25
          %v1404 = vmul.f32 %v1402, %v1310
          %v1405 = vmul.f32 %v1403, %v1311
          %v1406 = vmul.f32 %v1164, -1.25
          %v1407 = vmul.f32 %v1165, -1.25
          %v1408 = vmul.f32 %v1406, %v1320
          %v1409 = vmul.f32 %v1407, %v1321
          %v1410 = vadd.f32 %v1404, %v1408
          %v1411 = vadd.f32 %v1405, %v1409
          %v1412 = vmul.f32 %v1160, 1.25
          %v1413 = vmul.f32 %v1161, 1.25
          %v1414 = vmul.f32 %v1412, %v1320
          %v1415 = vmul.f32 %v1413, %v1321
          %v1416 = vmul.f32 %v1166, -1.25
          %v1417 = vmul.f32 %v1167, -1.25
          %v1418 = vmul.f32 %v1416, %v1330
          %v1419 = vmul.f32 %v1417, %v1331
          %v1420 = vadd.f32 %v1414, %v1418
          %v1421 = vadd.f32 %v1415, %v1419
          %v1422 = vmul.f32 %v1162, 1.25
          %v1423 = vmul.f32 %v1163, 1.25
          %v1424 = vmul.f32 %v1422, %v1330
          %v1425 = vmul.f32 %v1423, %v1331
          %v1426 = vmul.f32 %v1168, -1.25
          %v1427 = vmul.f32 %v1169, -1.25
          %v1428 = vmul.f32 %v1426, %v1340
          %v1429 = vmul.f32 %v1427, %v1341
          %v1430 = vadd.f32 %v1424, %v1428
          %v1431 = vadd.f32 %v1425, %v1429
          %v1432 = vmul.f32 %v1164, 1.25
          %v1433 = vmul.f32 %v1165, 1.25
          %v1434 = vmul.f32 %v1432, %v1340
          %v1435 = vmul.f32 %v1433, %v1341
          %v1436 = vmul.f32 %v1170, -1.25
          %v1437 = vmul.f32 %v1171, -1.25
          %v1438 = vmul.f32 %v1436, %v1350
          %v1439 = vmul.f32 %v1437, %v1351
          %v1440 = vadd.f32 %v1434, %v1438
          %v1441 = vadd.f32 %v1435, %v1439
          %v1442 = vmul.f32 %v1166, 1.25
          %v1443 = vmul.f32 %v1167, 1.25
          %v1444 = vmul.f32 %v1442, %v1350
          %v1445 = vmul.f32 %v1443, %v1351
          %v1446 = vmul.f32 %v1172, -1.25
          %v1447 = vmul.f32 %v1173, -1.25
          %v1448 = vmul.f32 %v1446, %v1360
          %v1449 = vmul.f32 %v1447, %v1361
          %v1450 = vadd.f32 %v1444, %v1448
          %v1451 = vadd.f32 %v1445, %v1449
          %v1452 = vmul.f32 %v1150, 0.8333333
          %v1453 = vmul.f32 %v1151, 0.8333333
          %v1454 = vmul.f32 %v1452, %v1370
          %v1455 = vmul.f32 %v1453, %v1371
          %v1456 = vmul.f32 %v1158, -0.8333333
          %v1457 = vmul.f32 %v1159, -0.8333333
          %v1458 = vmul.f32 %v1456, %v1380
          %v1459 = vmul.f32 %v1457, %v1381
          %v1460 = vadd.f32 %v1454, %v1458
          %v1461 = vadd.f32 %v1455, %v1459
          %v1462 = vmul.f32 %v1152, 0.8333333
          %v1463 = vmul.f32 %v1153, 0.8333333
          %v1464 = vmul.f32 %v1462, %v1380
          %v1465 = vmul.f32 %v1463, %v1381
          %v1466 = vmul.f32 %v1160, -0.8333333
          %v1467 = vmul.f32 %v1161, -0.8333333
          %v1468 = vmul.f32 %v1466, %v1390
          %v1469 = vmul.f32 %v1467, %v1391
          %v1470 = vadd.f32 %v1464, %v1468
          %v1471 = vadd.f32 %v1465, %v1469
          %v1472 = vmul.f32 %v1154, 0.8333333
          %v1473 = vmul.f32 %v1155, 0.8333333
          %v1474 = vmul.f32 %v1472, %v1390
          %v1475 = vmul.f32 %v1473, %v1391
          %v1476 = vmul.f32 %v1162, -0.8333333
          %v1477 = vmul.f32 %v1163, -0.8333333
          %v1478 = vmul.f32 %v1476, %v1400
          %v1479 = vmul.f32 %v1477, %v1401
          %v1480 = vadd.f32 %v1474, %v1478
          %v1481 = vadd.f32 %v1475, %v1479
          %v1482 = vmul.f32 %v1156, 0.8333333
          %v1483 = vmul.f32 %v1157, 0.8333333
          %v1484 = vmul.f32 %v1482, %v1400
          %v1485 = vmul.f32 %v1483, %v1401
          %v1486 = vmul.f32 %v1164, -0.8333333
          %v1487 = vmul.f32 %v1165, -0.8333333
          %v1488 = vmul.f32 %v1486, %v1410
          %v1489 = vmul.f32 %v1487, %v1411
          %v1490 = vadd.f32 %v1484, %v1488
          %v1491 = vadd.f32 %v1485, %v1489
          %v1492 = vmul.f32 %v1158, 0.8333333
          %v1493 = vmul.f32 %v1159, 0.8333333
          %v1494 = vmul.f32 %v1492, %v1410
          %v1495 = vmul.f32 %v1493, %v1411
          %v1496 = vmul.f32 %v1166, -0.8333333
          %v1497 = vmul.f32 %v1167, -0.8333333
          %v1498 = vmul.f32 %v1496, %v1420
          %v1499 = vmul.f32 %v1497, %v1421
          %v1500 = vadd.f32 %v1494, %v1498
          %v1501 = vadd.f32 %v1495, %v1499
          %v1502 = vmul.f32 %v1160, 0.8333333
          %v1503 = vmul.f32 %v1161, 0.8333333
          %v1504 = vmul.f32 %v1502, %v1420
          %v1505 = vmul.f32 %v1503, %v1421
          %v1506 = vmul.f32 %v1168, -0.8333333
          %v1507 = vmul.f32 %v1169, -0.8333333
          %v1508 = vmul.f32 %v1506, %v1430
          %v1509 = vmul.f32 %v1507, %v1431
          %v1510 = vadd.f32 %v1504, %v1508
          %v1511 = vadd.f32 %v1505, %v1509
          %v1512 = vmul.f32 %v1162, 0.8333333
          %v1513 = vmul.f32 %v1163, 0.8333333
          %v1514 = vmul.f32 %v1512, %v1430
          %v1515 = vmul.f32 %v1513, %v1431
          %v1516 = vmul.f32 %v1170, -0.8333333
          %v1517 = vmul.f32 %v1171, -0.8333333
          %v1518 = vmul.f32 %v1516, %v1440
          %v1519 = vmul.f32 %v1517, %v1441
          %v1520 = vadd.f32 %v1514, %v1518
          %v1521 = vadd.f32 %v1515, %v1519
          %v1522 = vmul.f32 %v1164, 0.8333333
          %v1523 = vmul.f32 %v1165, 0.8333333
          %v1524 = vmul.f32 %v1522, %v1440
          %v1525 = vmul.f32 %v1523, %v1441
          %v1526 = vmul.f32 %v1172, -0.8333333
          %v1527 = vmul.f32 %v1173, -0.8333333
          %v1528 = vmul.f32 %v1526, %v1450
          %v1529 = vmul.f32 %v1527, %v1451
          %v1530 = vadd.f32 %v1524, %v1528
          %v1531 = vadd.f32 %v1525, %v1529
          %v1532 = vpack.c.bf16 %v1461, %v1460
          %v1533 = vpack.c.bf16 %v1471, %v1470
          %v1534 = vpack.c.bf16 %v1481, %v1480
          %v1535 = vpack.c.bf16 %v1491, %v1490
          %v1536 = vpack.c.bf16 %v1501, %v1500
          %v1537 = vpack.c.bf16 %v1511, %v1510
          %v1538 = vpack.c.bf16 %v1521, %v1520
          %v1539 = vpack.c.bf16 %v1531, %v1530
          %1541 = vrot.lane.b32.xlu0 %v1532, 64
          %v1542 = vpop.permute.xlu0 %1541
          %1544 = vrot.lane.b32.xlu0 %v1534, 64
          %v1545 = vpop.permute.xlu0 %1544
          %1547 = vrot.lane.b32.xlu0 %v1536, 64
          %v1548 = vpop.permute.xlu0 %1547
          %1550 = vrot.lane.b32.xlu0 %v1538, 64
          %v1551 = vpop.permute.xlu0 %1550
          %vm1552 = vcmask 523264
          %v1555 = vsel %vm1552, %v1125, %v1542
          %v1559 = vsel %vm1552, %v1533, %v1545
          %v1563 = vsel %vm1552, %v1535, %v1548
          %v1567 = vsel %vm1552, %v1537, %v1551
          %v1569 = vld [vmem:[%s347] sm:$0xf]
          %v1570 = vld [vmem:[%s347 + $0x4] sm:$0xf]
          %v1571 = vld [vmem:[%s347 + $0x8] sm:$0xf]
          %v1572 = vld [vmem:[%s347 + $0xc] sm:$0xf]
          %v1573 = vld [vmem:[%s347 + $0x10] sm:$0xf]
          %v1574 = vld [vmem:[%s347 + $0x14] sm:$0xf]
          %v1575 = vld [vmem:[%s347 + $0x18] sm:$0xf]
          %v1576 = vld [vmem:[%s347 + $0x1c] sm:$0xf]
          %v1577 = vld [vmem:[%s347 + $0x20] sm:$0xf]
          %v1578 = vld [vmem:[%s347 + $0x24] sm:$0xf]
          %v1579 = vld [vmem:[%s347 + $0x28] sm:$0xf]
          %v1580 = vld [vmem:[%s347 + $0x2c] sm:$0xf]
          %v1581 = vld [vmem:[%s347 + $0x30] sm:$0xf]
          %v1582 = vld [vmem:[%s347 + $0x34] sm:$0xf]
          %v1583 = vld [vmem:[%s347 + $0x38] sm:$0xf]
          %v1584 = vld [vmem:[%s347 + $0x3c] sm:$0xf]
          %v1585 = vld [vmem:[%s347 + $0x40] sm:$0xf]
          %v1586 = vld [vmem:[%s347 + $0x44] sm:$0xf]
          %v1587 = vld [vmem:[%s347 + $0x48] sm:$0xf]
          %v1588 = vld [vmem:[%s347 + $0x4c] sm:$0xf]
          %v1589 = vld [vmem:[%s347 + $0x50] sm:$0xf]
          %v1590 = vld [vmem:[%s347 + $0x54] sm:$0xf]
          %v1591 = vld [vmem:[%s347 + $0x58] sm:$0xf]
          %v1592 = vld [vmem:[%s347 + $0x5c] sm:$0xf]
          %v1593 = vld [vmem:[%s347 + $0x60] sm:$0xf]
          %v1594 = vld [vmem:[%s347 + $0x64] sm:$0xf]
          %v1595 = vld [vmem:[%s347 + $0x68] sm:$0xf]
          %v1596 = vld [vmem:[%s347 + $0x6c] sm:$0xf]
          %v1597 = vld [vmem:[%s347 + $0x70] sm:$0xf]
          %v1598 = vld [vmem:[%s347 + $0x74] sm:$0xf]
          %v1599 = vld [vmem:[%s347 + $0x78] sm:$0xf]
          %v1600 = vld [vmem:[%s347 + $0x7c] sm:$0xf]
          %v1601 = vld [vmem:[%s347 + $0x80] sm:$0xf]
          %v1602 = vld [vmem:[%s347 + $0x84] sm:$0xf]
          %v1603 = vld [vmem:[%s347 + $0x88] sm:$0xf]
          %v1604 = vld [vmem:[%s347 + $0x8c] sm:$0xf]
          %v1605 = vld [vmem:[%s347 + $0x90] sm:$0xf]
          %v1606 = vld [vmem:[%s347 + $0x94] sm:$0xf]
          %v1607 = vld [vmem:[%s347 + $0x98] sm:$0xf]
          %v1608 = vld [vmem:[%s347 + $0x9c] sm:$0xf]
          %v1609 = vld [vmem:[%s347 + $0xa0] sm:$0xf]
          %v1610 = vld [vmem:[%s347 + $0xa4] sm:$0xf]
          %v1611 = vld [vmem:[%s347 + $0xa8] sm:$0xf]
          %v1612 = vld [vmem:[%s347 + $0xac] sm:$0xf]
          %v1613 = vld [vmem:[%s347 + $0xb0] sm:$0xf]
          %v1614 = vld [vmem:[%s347 + $0xb4] sm:$0xf]
          %v1615 = vld [vmem:[%s347 + $0xb8] sm:$0xf]
          %v1616 = vld [vmem:[%s347 + $0xbc] sm:$0xf]
          %v1617 = vld [vmem:[%s347 + $0xc0] sm:$0xf]
          %v1618 = vld [vmem:[%s347 + $0xc4] sm:$0xf]
          %v1619 = vld [vmem:[%s347 + $0xc8] sm:$0xf]
          %v1620 = vld [vmem:[%s347 + $0xcc] sm:$0xf]
          %v1621 = vld [vmem:[%s347 + $0xd0] sm:$0xf]
          %v1622 = vld [vmem:[%s347 + $0xd4] sm:$0xf]
          %v1623 = vld [vmem:[%s347 + $0xd8] sm:$0xf]
          %v1624 = vld [vmem:[%s347 + $0xdc] sm:$0xf]
          %v1625 = vld [vmem:[%s347 + $0xe0] sm:$0xf]
          %v1626 = vld [vmem:[%s347 + $0xe4] sm:$0xf]
          %v1627 = vld [vmem:[%s347 + $0xe8] sm:$0xf]
          %v1628 = vld [vmem:[%s347 + $0xec] sm:$0xf]
          %v1629 = vld [vmem:[%s347 + $0xf0] sm:$0xf]
          %v1630 = vld [vmem:[%s347 + $0xf4] sm:$0xf]
          %v1631 = vld [vmem:[%s347 + $0xf8] sm:$0xf]
          %v1632 = vld [vmem:[%s347 + $0xfc] sm:$0xf]
          %v1633 = vld [vmem:[%s347 + $0x100] sm:$0xf]
          %v1634 = vld [vmem:[%s347 + $0x104] sm:$0xf]
          %v1635 = vld [vmem:[%s347 + $0x108] sm:$0xf]
          %v1636 = vld [vmem:[%s347 + $0x10c] sm:$0xf]
          %v1637 = vld [vmem:[%s347 + $0x110] sm:$0xf]
          %v1638 = vld [vmem:[%s347 + $0x114] sm:$0xf]
          %v1639 = vld [vmem:[%s347 + $0x118] sm:$0xf]
          %v1640 = vld [vmem:[%s347 + $0x11c] sm:$0xf]
          %v1713 = vunpack.c.l.b16 %v1569
          %v1714 = vunpack.c.l.b16 %v1570
          %v1715 = vunpack.c.l.b16 %v1571
          %v1716 = vunpack.c.l.b16 %v1572
          %v1717 = vunpack.c.l.b16 %v1573
          %v1718 = vunpack.c.l.b16 %v1574
          %v1719 = vunpack.c.l.b16 %v1575
          %v1720 = vunpack.c.l.b16 %v1576
          %v1721 = vunpack.c.l.b16 %v1577
          %v1722 = vunpack.c.l.b16 %v1578
          %v1723 = vunpack.c.l.b16 %v1579
          %v1724 = vunpack.c.l.b16 %v1580
          %v1725 = vunpack.c.l.b16 %v1581
          %v1726 = vunpack.c.l.b16 %v1582
          %v1727 = vunpack.c.l.b16 %v1583
          %v1728 = vunpack.c.l.b16 %v1584
          %v1729 = vunpack.c.l.b16 %v1585
          %v1730 = vunpack.c.l.b16 %v1586
          %v1731 = vunpack.c.l.b16 %v1587
          %v1732 = vunpack.c.l.b16 %v1588
          %v1733 = vunpack.c.l.b16 %v1589
          %v1734 = vunpack.c.l.b16 %v1590
          %v1735 = vunpack.c.l.b16 %v1591
          %v1736 = vunpack.c.l.b16 %v1592
          %v1737 = vunpack.c.l.b16 %v1593
          %v1738 = vunpack.c.l.b16 %v1594
          %v1739 = vunpack.c.l.b16 %v1595
          %v1740 = vunpack.c.l.b16 %v1596
          %v1741 = vunpack.c.l.b16 %v1597
          %v1742 = vunpack.c.l.b16 %v1598
          %v1743 = vunpack.c.l.b16 %v1599
          %v1744 = vunpack.c.l.b16 %v1600
          %v1745 = vunpack.c.l.b16 %v1601
          %v1746 = vunpack.c.l.b16 %v1602
          %v1747 = vunpack.c.l.b16 %v1603
          %v1748 = vunpack.c.l.b16 %v1604
          %v1749 = vunpack.c.l.b16 %v1605
          %v1750 = vunpack.c.l.b16 %v1606
          %v1751 = vunpack.c.l.b16 %v1607
          %v1752 = vunpack.c.l.b16 %v1608
          %v1753 = vunpack.c.l.b16 %v1609
          %v1754 = vunpack.c.l.b16 %v1610
          %v1755 = vunpack.c.l.b16 %v1611
          %v1756 = vunpack.c.l.b16 %v1612
          %v1757 = vunpack.c.l.b16 %v1613
          %v1758 = vunpack.c.l.b16 %v1614
          %v1759 = vunpack.c.l.b16 %v1615
          %v1760 = vunpack.c.l.b16 %v1616
          %v1761 = vunpack.c.l.b16 %v1617
          %v1762 = vunpack.c.l.b16 %v1618
          %v1763 = vunpack.c.l.b16 %v1619
          %v1764 = vunpack.c.l.b16 %v1620
          %v1765 = vunpack.c.l.b16 %v1621
          %v1766 = vunpack.c.l.b16 %v1622
          %v1767 = vunpack.c.l.b16 %v1623
          %v1768 = vunpack.c.l.b16 %v1624
          %v1769 = vunpack.c.l.b16 %v1625
          %v1770 = vunpack.c.l.b16 %v1626
          %v1771 = vunpack.c.l.b16 %v1627
          %v1772 = vunpack.c.l.b16 %v1628
          %v1773 = vunpack.c.l.b16 %v1629
          %v1774 = vunpack.c.l.b16 %v1630
          %v1775 = vunpack.c.l.b16 %v1631
          %v1776 = vunpack.c.l.b16 %v1632
          %v1777 = vunpack.c.l.b16 %v1633
          %v1778 = vunpack.c.l.b16 %v1634
          %v1779 = vunpack.c.l.b16 %v1635
          %v1780 = vunpack.c.l.b16 %v1636
          %v1781 = vunpack.c.l.b16 %v1637
          %v1782 = vunpack.c.l.b16 %v1638
          %v1783 = vunpack.c.l.b16 %v1639
          %v1784 = vunpack.c.l.b16 %v1640
          %v1785 = vpack.c.b16 %v1714, %v1713
          %v1786 = vpack.c.b16 %v1716, %v1715
          %v1787 = vpack.c.b16 %v1718, %v1717
          %v1788 = vpack.c.b16 %v1720, %v1719
          %v1789 = vpack.c.b16 %v1722, %v1721
          %v1790 = vpack.c.b16 %v1724, %v1723
          %v1791 = vpack.c.b16 %v1726, %v1725
          %v1792 = vpack.c.b16 %v1728, %v1727
          %v1793 = vpack.c.b16 %v1730, %v1729
          %v1794 = vpack.c.b16 %v1732, %v1731
          %v1795 = vpack.c.b16 %v1734, %v1733
          %v1796 = vpack.c.b16 %v1736, %v1735
          %v1797 = vpack.c.b16 %v1738, %v1737
          %v1798 = vpack.c.b16 %v1740, %v1739
          %v1799 = vpack.c.b16 %v1742, %v1741
          %v1800 = vpack.c.b16 %v1744, %v1743
          %v1801 = vpack.c.b16 %v1746, %v1745
          %v1802 = vpack.c.b16 %v1748, %v1747
          %v1803 = vpack.c.b16 %v1750, %v1749
          %v1804 = vpack.c.b16 %v1752, %v1751
          %v1805 = vpack.c.b16 %v1754, %v1753
          %v1806 = vpack.c.b16 %v1756, %v1755
          %v1807 = vpack.c.b16 %v1758, %v1757
          %v1808 = vpack.c.b16 %v1760, %v1759
          %v1809 = vpack.c.b16 %v1762, %v1761
          %v1810 = vpack.c.b16 %v1764, %v1763
          %v1811 = vpack.c.b16 %v1766, %v1765
          %v1812 = vpack.c.b16 %v1768, %v1767
          %v1813 = vpack.c.b16 %v1770, %v1769
          %v1814 = vpack.c.b16 %v1772, %v1771
          %v1815 = vpack.c.b16 %v1774, %v1773
          %v1816 = vpack.c.b16 %v1776, %v1775
          %v1817 = vpack.c.b16 %v1778, %v1777
          %v1818 = vpack.c.b16 %v1780, %v1779
          %v1819 = vpack.c.b16 %v1782, %v1781
          %v1820 = vpack.c.b16 %v1784, %v1783
          %v1858 = vsel %vm1552, %v1539, 0
          %1860 = vmatprep.subr.bf16.mxu0 0
          %1861 = vmatpush1.bf16.msra.mxu0 %v1792
          %1862 = vmatprep.subr.bf16.mxu0 0
          %1863 = vmatpush1.bf16.msra.mxu0 %v1791
          %1864 = vmatprep.subr.bf16.mxu0 0
          %1865 = vmatpush1.bf16.msra.mxu0 %v1790
          %1866 = vmatprep.subr.bf16.mxu0 0
          %1867 = vmatpush1.bf16.msra.mxu0 %v1789
          %1868 = vmatprep.subr.bf16.mxu0 0
          %1869 = vmatpush1.bf16.msra.mxu0 %v1788
          %1870 = vmatprep.subr.bf16.mxu0 0
          %1871 = vmatpush1.bf16.msra.mxu0 %v1787
          %1872 = vmatprep.subr.bf16.mxu0 0
          %1873 = vmatpush1.bf16.msra.mxu0 %v1786
          %1874 = vmatprep.subr.bf16.mxu0 0
          %1875 = vmatpush1.bf16.msra.mxu0 %v1785
          %1876 = vmatprep.subr.bf16.mxu0 0
          %1877 = vmatpush2.bf16.msra.mxu0 %v1800
          %1878 = vmatprep.subr.bf16.mxu0 0
          %1879 = vmatpush2.bf16.msra.mxu0 %v1799
          %1880 = vmatprep.subr.bf16.mxu0 0
          %1881 = vmatpush2.bf16.msra.mxu0 %v1798
          %1882 = vmatprep.subr.bf16.mxu0 0
          %1883 = vmatpush2.bf16.msra.mxu0 %v1797
          %1884 = vmatprep.subr.bf16.mxu0 0
          %1885 = vmatpush2.bf16.msra.mxu0 %v1796
          %1886 = vmatprep.subr.bf16.mxu0 0
          %1887 = vmatpush2.bf16.msra.mxu0 %v1795
          %1888 = vmatprep.subr.bf16.mxu0 0
          %1889 = vmatpush2.bf16.msra.mxu0 %v1794
          %1890 = vmatprep.subr.bf16.mxu0 0
          %1891 = vmatpush2.bf16.msra.mxu0 %v1793
          %1892 = vmatprep.mubr.bf16.mxu0 %v1559
          %1893 = vmatmul.mubr.bf16.gmra.mxu0 %v1555
          %v1894 = vpop.f32.mrf.mxu0
          %v1895 = vadd.f32 0.0, %v1894
          %v1896 = vpop.f32.mrf.mxu0
          %v1897 = vpop.f32.mrf.mxu0
          %v1898 = vadd.f32 0.0, %v1897
          %v1899 = vpop.f32.mrf.mxu0
          %1900 = vdwg.mxu0
          %1901 = vmatprep.subr.bf16.mxu0 0
          %1902 = vmatpush1.bf16.msra.mxu0 %v1808
          %1903 = vmatprep.subr.bf16.mxu0 0
          %1904 = vmatpush1.bf16.msra.mxu0 %v1807
          %1905 = vmatprep.subr.bf16.mxu0 0
          %1906 = vmatpush1.bf16.msra.mxu0 %v1806
          %1907 = vmatprep.subr.bf16.mxu0 0
          %1908 = vmatpush1.bf16.msra.mxu0 %v1805
          %1909 = vmatprep.subr.bf16.mxu0 0
          %1910 = vmatpush1.bf16.msra.mxu0 %v1804
          %1911 = vmatprep.subr.bf16.mxu0 0
          %1912 = vmatpush1.bf16.msra.mxu0 %v1803
          %1913 = vmatprep.subr.bf16.mxu0 0
          %1914 = vmatpush1.bf16.msra.mxu0 %v1802
          %1915 = vmatprep.subr.bf16.mxu0 0
          %1916 = vmatpush1.bf16.msra.mxu0 %v1801
          %1917 = vmatprep.subr.bf16.mxu0 0
          %1918 = vmatpush2.bf16.msra.mxu0 %v1816
          %1919 = vmatprep.subr.bf16.mxu0 0
          %1920 = vmatpush2.bf16.msra.mxu0 %v1815
          %1921 = vmatprep.subr.bf16.mxu0 0
          %1922 = vmatpush2.bf16.msra.mxu0 %v1814
          %1923 = vmatprep.subr.bf16.mxu0 0
          %1924 = vmatpush2.bf16.msra.mxu0 %v1813
          %1925 = vmatprep.subr.bf16.mxu0 0
          %1926 = vmatpush2.bf16.msra.mxu0 %v1812
          %1927 = vmatprep.subr.bf16.mxu0 0
          %1928 = vmatpush2.bf16.msra.mxu0 %v1811
          %1929 = vmatprep.subr.bf16.mxu0 0
          %1930 = vmatpush2.bf16.msra.mxu0 %v1810
          %1931 = vmatprep.subr.bf16.mxu0 0
          %1932 = vmatpush2.bf16.msra.mxu0 %v1809
          %1933 = vmatprep.mubr.bf16.mxu0 %v1567
          %1934 = vmatmul.mubr.bf16.gmra.mxu0 %v1563
          %v1935 = vpop.f32.mrf.mxu0
          %v1936 = vadd.f32 %v1895, %v1935
          %v1937 = vpop.f32.mrf.mxu0
          %v1938 = vpop.f32.mrf.mxu0
          %v1939 = vadd.f32 %v1898, %v1938
          %v1940 = vpop.f32.mrf.mxu0
          %1941 = vdwg.mxu0
          %1942 = vmatprep.subr.bf16.mxu0 0
          %1943 = vmatpush1.bf16.msra.mxu0 0
          %1944 = vmatprep.subr.bf16.mxu0 0
          %1945 = vmatpush1.bf16.msra.mxu0 0
          %1946 = vmatprep.subr.bf16.mxu0 0
          %1947 = vmatpush1.bf16.msra.mxu0 0
          %1948 = vmatprep.subr.bf16.mxu0 0
          %1949 = vmatpush1.bf16.msra.mxu0 0
          %1950 = vmatprep.subr.bf16.mxu0 0
          %1951 = vmatpush1.bf16.msra.mxu0 %v1820
          %1952 = vmatprep.subr.bf16.mxu0 0
          %1953 = vmatpush1.bf16.msra.mxu0 %v1819
          %1954 = vmatprep.subr.bf16.mxu0 0
          %1955 = vmatpush1.bf16.msra.mxu0 %v1818
          %1956 = vmatprep.subr.bf16.mxu0 0
          %1957 = vmatpush1.bf16.msra.mxu0 %v1817
          %1958 = vmatprep.subr.bf16.mxu0 0
          %1959 = vmatpush2.bf16.msra.mxu0 0
          %1960 = vmatprep.subr.bf16.mxu0 0
          %1961 = vmatpush2.bf16.msra.mxu0 0
          %1962 = vmatprep.subr.bf16.mxu0 0
          %1963 = vmatpush2.bf16.msra.mxu0 0
          %1964 = vmatprep.subr.bf16.mxu0 0
          %1965 = vmatpush2.bf16.msra.mxu0 0
          %1966 = vmatprep.subr.bf16.mxu0 0
          %1967 = vmatpush2.bf16.msra.mxu0 0
          %1968 = vmatprep.subr.bf16.mxu0 0
          %1969 = vmatpush2.bf16.msra.mxu0 0
          %1970 = vmatprep.subr.bf16.mxu0 0
          %1971 = vmatpush2.bf16.msra.mxu0 0
          %1972 = vmatprep.subr.bf16.mxu0 0
          %1973 = vmatpush2.bf16.msra.mxu0 0
          %1974 = vmatprep.mubr.bf16.mxu0 0
          %1975 = vmatmul.mubr.bf16.gmra.mxu0 %v1858
          %v1976 = vpop.f32.mrf.mxu0
          %v1977 = vadd.f32 %v1936, %v1976
          %v1978 = vpop.f32.mrf.mxu0
          %v1979 = vpop.f32.mrf.mxu0
          %v1980 = vadd.f32 %v1939, %v1979
          %v1981 = vpop.f32.mrf.mxu0
          %1982 = vdwg.mxu0
          %v1983 = vld [vmem:[#allocation3] sm:$0xff]
          %v1984 = vld [vmem:[#allocation3 + $0x8] sm:$0xff]
          %v1985 = vld [vmem:[%s318] sm:$0xff]
          %v1986 = vld [vmem:[%s318 + $0x8] sm:$0xff]
          %1988 = vset.pattern.permute.xlu0 0
          %1989 = vperm.xlu0 %1988, %v1985
          %v1990 = vpop.permute.xlu0 %1989
          %1993 = vset.pattern.permute.xlu0 0
          %1994 = vperm.xlu0 %1993, %v1986
          %v1995 = vpop.permute.xlu0 %1994
          %v1997 = vmul.f32 %v1990, %v1977
          %v1998 = vmul.f32 %v1995, %v1980
          %v1999 = vadd.f32 %v1983, %v1997
          %v2000 = vadd.f32 %v1984, %v1998
          %2001 = vst.msk [vmem:[#allocation3] sm:$0xff] %vm1015, %v1999
          %2002 = vst.msk [vmem:[#allocation3 + $0x8] sm:$0xff] %vm1015, %v2000
        $region44: #{tpu_custom_call.1} parent=35 // pred_fallthru
          _
        %p2003 = scmp.eq.s32.totalorder %s30, 3
        // Predicated region
        $region45: #{tpu_custom_call.1} parent=35 // pred_check
          %p2004 = pneg %p2003
        $region46: #{tpu_custom_call.1} parent=35 // pred_check_branch
          %2006 = sbr.rel (%p2004) target = $region48
        $region47: #{tpu_custom_call.1} parent=35 // pred_region
          %v2007 = vld [vmem:[#allocation3] sm:$0xff]
          %v2008 = vld [vmem:[#allocation3 + $0x8] sm:$0xff]
          %vm2009 = vcmask 261120
          %2010 = vst.msk [vmem:[#allocation7] sm:$0xff] %vm2009, %v2007
          %2011 = vst.msk [vmem:[#allocation7 + $0x8] sm:$0xff] %vm2009, %v2008
        $region48: #{tpu_custom_call.1} parent=35 // pred_fallthru
          _
        // Predicated region
        $region49: #{tpu_custom_call.1} parent=35 // pred_check
          %p2012 = pneg %p179
        $region50: #{tpu_custom_call.1} parent=35 // pred_check_branch
          %2014 = sbr.rel (%p2012) target = $region52
        $region51: #{tpu_custom_call.1} parent=35 // pred_region
          %s2015 = smul.u32 2, %s29
          %s2017 = ssub.s32 256, 256
          %2018 = vsyncadd [#allocation8], %s2017
          %s2019 = smul.addr %s2015, 128
          %s2020 = scalar_lea.hbm %s6, %s2019
          %s2021 = sshll.u32 [#allocation7], 4
          %s2022 = int_to_ptr.vmem [resolvable:$true] %s2021
          %2027 = dma.vmem_to_hbm [thread:$0]  %s2022, 256, %s2020, [#allocation8], 128, 128, 8
        $region52: #{tpu_custom_call.1} parent=35 // pred_fallthru
          _
        // Predicated region
        $region53: #{tpu_custom_call.1} parent=35 // pred_check
          %p2028 = pneg %p179
        $region54: #{tpu_custom_call.1} parent=35 // pred_check_branch
          %2030 = sbr.rel (%p2028) target = $region56
        $region55: #{tpu_custom_call.1} parent=35 // pred_region
          %2031 = dma.done [#allocation8], 256
        $region56: #{tpu_custom_call.1} parent=35 // pred_fallthru
          _
      $region36: #{tpu_custom_call.1} parent=5 // pred_fallthru
        _
      %p2032 = scmp.le.s32.totalorder 2, %s20
      // Predicated region
      $region57: #{tpu_custom_call.1} parent=5 // pred_check
        %p2033 = pneg %p2032
      $region58: #{tpu_custom_call.1} parent=5 // pred_check_branch
        %2035 = sbr.rel (%p2033) target = $region60
      $region59: #{tpu_custom_call.1} parent=5 // pred_region
        %s2036 = ssub.s32 %s20, 2
      $region60: #{tpu_custom_call.1} parent=5 // pred_fallthru
        _
    $region6: #{tpu_custom_call.1} parent=1 // loop_footer
      %s24 = sadd.s32 1, %s20
    $region7: #{tpu_custom_call.1} parent=1 // loop_footer_branch
      %19 = sbr.rel target = $region3
    $region8: #{tpu_custom_call.1} parent=1 // loop_exit
      _
    %2037 = vsyncpa [#allocation8], 1
    %s2038 = scalar_lea.sflag [#allocation8], 1
    %2039 = vsyncpa %s2038, 1

</llo_original>
